<compile_context>
chip_gen: v7x
topology: tpu7x:2x2x1
jax: 0.10.0
libtpu: 0.0.40
codegen_flags: <defaults>
</compile_context>

<pallas_src>
import functools

import numpy as np
import jax
import jax.numpy as jnp
from jax.experimental import pallas as pl
from jax.experimental.pallas import tpu as pltpu

EPS = 1e-5
TILE_ROWS = 256                    # row tile: multiple of 8/16 sublanes, VMEM-friendly
VMEM_LIMIT = 32 * 1024 * 1024      # explicit scoped-VMEM limit (safe on v5e/v6e/v7x)


def _round_up(x, m):
    return ((x + m - 1) // m) * m


# ---------------------------------------------------------------------------
# Pallas kernels
# ---------------------------------------------------------------------------
def _matmul_stats_kernel(p_ref, w_ref, b_ref, y_ref, stats_ref, *,
                         rows_true, tile_rows):
    """Pass 1: y = P @ W + b (bf16 MXU inputs, f32 accumulate) + partial
    per-channel sum / sum-of-squares for the batch-norm statistics."""
    i = pl.program_id(0)
    y = jnp.dot(p_ref[...], w_ref[...], preferred_element_type=jnp.float32)
    y = y + b_ref[...]
    y_ref[...] = y

    # Mask padding rows out of the batch statistics.
    ridx = i * tile_rows + jax.lax.broadcasted_iota(jnp.int32, y.shape, 0)
    ym = jnp.where(ridx < rows_true, y, 0.0)
    part = jnp.concatenate([jnp.sum(ym, axis=0, keepdims=True),
                            jnp.sum(ym * ym, axis=0, keepdims=True)], axis=0)

    @pl.when(i == 0)
    def _():
        stats_ref[...] = jnp.zeros_like(stats_ref)

    stats_ref[...] += part


def _bn_norm(y, st, g, be, inv_n):
    mu = st[0:1, :] * inv_n
    var = st[1:2, :] * inv_n - mu * mu          # biased batch variance (f32)
    scale = jax.lax.rsqrt(var + EPS) * g
    shift = be - mu * scale
    return jnp.maximum(y * scale + shift, 0.0)


def _bn_relu_kernel(y_ref, st_ref, g_ref, be_ref, o_ref, *, inv_n):
    """Pass 2 (conv1): normalize + ReLU; output bf16 (matmul LHS for conv2)."""
    r = _bn_norm(y_ref[...], st_ref[...], g_ref[...], be_ref[...], inv_n)
    o_ref[...] = r.astype(o_ref.dtype)


def _bn_relu_add_kernel(y_ref, st_ref, g_ref, be_ref, s_ref, o_ref, *, inv_n):
    """Pass 2 (conv2, stride==1): normalize + ReLU + residual add + ReLU."""
    r = _bn_norm(y_ref[...], st_ref[...], g_ref[...], be_ref[...], inv_n)
    o_ref[...] = jnp.maximum(r + s_ref[...], 0.0)


def _bn_relu_addmax_kernel(y_ref, st_ref, g_ref, be_ref,
                           sa_ref, sb_ref, sc_ref, sd_ref, o_ref, *, inv_n):
    """Pass 2 (conv2, stride==2): normalize + ReLU + 2x2-max-pooled skip + ReLU."""
    r = _bn_norm(y_ref[...], st_ref[...], g_ref[...], be_ref[...], inv_n)
    skip = jnp.maximum(jnp.maximum(sa_ref[...], sb_ref[...]),
                       jnp.maximum(sc_ref[...], sd_ref[...]))
    o_ref[...] = jnp.maximum(r + skip, 0.0)


def _matmul_bias_kernel(x_ref, w_ref, b_ref, o_ref):
    """1x1 fit_conv as a row-tiled matmul + bias (bf16 in, f32 out)."""
    o_ref[...] = jnp.dot(x_ref[...], w_ref[...],
                         preferred_element_type=jnp.float32) + b_ref[...]


# ---------------------------------------------------------------------------
# BlockSpec helpers
# ---------------------------------------------------------------------------
def _rt_spec(cols, tile_rows=TILE_ROWS):
    return pl.BlockSpec((tile_rows, cols), lambda i: (i, 0))


def _full_spec(shape):
    nd = len(shape)
    return pl.BlockSpec(shape, lambda i, _nd=nd: (0,) * _nd)


def _cparams(semantics):
    return pltpu.CompilerParams(dimension_semantics=semantics,
                                vmem_limit_bytes=VMEM_LIMIT)


# ---------------------------------------------------------------------------
# pallas_call wrappers (all row-tiled)
# ---------------------------------------------------------------------------
def _conv_stats(patches, w, bias, rows_true):
    rows_pad, k = patches.shape
    cp = w.shape[1]
    grid = (rows_pad // TILE_ROWS,)
    bytes_accessed = (patches.size * 2 + w.size * 2 + bias.size * 4
                      + rows_pad * cp * 4 + 2 * cp * 4)
    return pl.pallas_call(
        functools.partial(_matmul_stats_kernel,
                          rows_true=rows_true, tile_rows=TILE_ROWS),
        grid=grid,
        in_specs=[_rt_spec(k), _full_spec(w.shape), _full_spec(bias.shape)],
        out_specs=(_rt_spec(cp), _full_spec((2, cp))),
        out_shape=(jax.ShapeDtypeStruct((rows_pad, cp), jnp.float32),
                   jax.ShapeDtypeStruct((2, cp), jnp.float32)),
        compiler_params=_cparams(("arbitrary",)),   # resident stats accumulator
        cost_estimate=pl.CostEstimate(flops=2 * rows_pad * k * cp,
                                      transcendentals=0,
                                      bytes_accessed=bytes_accessed),
    )(patches, w, bias)


def _bn_relu(y, stats, gamma, beta, rows_true, out_dtype):
    rows_pad, cp = y.shape
    grid = (rows_pad // TILE_ROWS,)
    return pl.pallas_call(
        functools.partial(_bn_relu_kernel, inv_n=1.0 / rows_true),
        grid=grid,
        in_specs=[_rt_spec(cp), _full_spec((2, cp)),
                  _full_spec(gamma.shape), _full_spec(beta.shape)],
        out_specs=_rt_spec(cp),
        out_shape=jax.ShapeDtypeStruct((rows_pad, cp), out_dtype),
        compiler_params=_cparams(("parallel",)),
    )(y, stats, gamma, beta)


def _bn_relu_add(y, stats, gamma, beta, skips, rows_true):
    rows_pad, cp = y.shape
    grid = (rows_pad // TILE_ROWS,)
    kernel = _bn_relu_add_kernel if len(skips) == 1 else _bn_relu_addmax_kernel
    return pl.pallas_call(
        functools.partial(kernel, inv_n=1.0 / rows_true),
        grid=grid,
        in_specs=[_rt_spec(cp), _full_spec((2, cp)),
                  _full_spec(gamma.shape), _full_spec(beta.shape)]
                 + [_rt_spec(cp)] * len(skips),
        out_specs=_rt_spec(cp),
        out_shape=jax.ShapeDtypeStruct((rows_pad, cp), jnp.float32),
        compiler_params=_cparams(("parallel",)),
    )(y, stats, gamma, beta, *skips)


def _fit_conv(xf, w, bias):
    rows_pad, k = xf.shape
    cp = w.shape[1]
    grid = (rows_pad // TILE_ROWS,)
    return pl.pallas_call(
        _matmul_bias_kernel,
        grid=grid,
        in_specs=[_rt_spec(k), _full_spec(w.shape), _full_spec(bias.shape)],
        out_specs=_rt_spec(cp),
        out_shape=jax.ShapeDtypeStruct((rows_pad, cp), jnp.float32),
        compiler_params=_cparams(("parallel",)),
        cost_estimate=pl.CostEstimate(
            flops=2 * rows_pad * k * cp, transcendentals=0,
            bytes_accessed=xf.size * 2 + w.size * 2 + rows_pad * cp * 4),
    )(xf, w, bias)


# ---------------------------------------------------------------------------
# Plain-JAX glue: im2col (3x3, padding=1), weight / vector layout helpers
# ---------------------------------------------------------------------------
def _im2col_3x3(x_nhwc, stride):
    # TODO(synk): replace HBM im2col with in-kernel 9-tap accumulation over
    # shifted input windows to cut the 9x patch-slab HBM traffic.
    n, h, w, c = x_nhwc.shape
    ho = (h + 2 - 3) // stride + 1
    wo = (w + 2 - 3) // stride + 1
    xp = jnp.pad(x_nhwc, ((0, 0), (1, 1), (1, 1), (0, 0)))
    cols = []
    for ky in range(3):
        for kx in range(3):
            cols.append(xp[:, ky:ky + stride * (ho - 1) + 1:stride,
                           kx:kx + stride * (wo - 1) + 1:stride, :])
    pat = jnp.concatenate(cols, axis=-1)              # (N, Ho, Wo, 9*C), tap-major
    return pat.reshape(n * ho * wo, 9 * c), (n, ho, wo)


def _flatten_w3x3(w_oihw, cp):
    # (Cout, Cin, 3, 3) -> (9*Cin, Cp) bf16, row order (ky, kx, cin) matching im2col
    wf = jnp.transpose(w_oihw, (2, 3, 1, 0)).reshape(-1, w_oihw.shape[0])
    return jnp.pad(wf, ((0, 0), (0, cp - w_oihw.shape[0]))).astype(jnp.bfloat16)


def _row_vec(v, cp):
    return jnp.pad(v[None, :], ((0, 0), (0, cp - v.shape[0])))


# ---------------------------------------------------------------------------
# ResBlock forward
# ---------------------------------------------------------------------------
@functools.partial(jax.jit, static_argnames=("in_f", "out_f", "stride"))
def res_block_forward(x_nchw, params, in_f, out_f, stride):
    n, cin, h, w = x_nchw.shape
    assert cin == in_f
    cp = _round_up(max(out_f, 128), 128)              # lane-dense channel padding
    x = jnp.transpose(x_nchw, (0, 2, 3, 1))           # NHWC f32

    # --- conv1 + BN1(batch stats) + ReLU; intermediate stored bf16 ---------
    p1, (_, h1, w1) = _im2col_3x3(x.astype(jnp.bfloat16), stride)
    rows1 = n * h1 * w1
    rows1_pad = _round_up(rows1, TILE_ROWS)
    p1 = jnp.pad(p1, ((0, rows1_pad - rows1), (0, 0)))
    y1, st1 = _conv_stats(p1, _flatten_w3x3(params["w1"], cp),
                          _row_vec(params["b1"], cp), rows1)
    r1 = _bn_relu(y1, st1, _row_vec(params["g1"], cp),
                  _row_vec(params["be1"], cp), rows1, jnp.bfloat16)
    r1_nhwc = r1[:rows1, :out_f].reshape(n, h1, w1, out_f)

    # --- skip path: optional 1x1 fit_conv, optional 2x2 max-pool -----------
    if in_f != out_f:
        rows_x = n * h * w
        rows_x_pad = _round_up(rows_x, TILE_ROWS)
        xf = jnp.pad(x.reshape(rows_x, in_f).astype(jnp.bfloat16),
                     ((0, rows_x_pad - rows_x), (0, 0)))
        wfit = jnp.pad(jnp.transpose(params["wfit"].reshape(out_f, in_f)),
                       ((0, 0), (0, cp - out_f))).astype(jnp.bfloat16)
        sflat = _fit_conv(xf, wfit, _row_vec(params["bfit"], cp))
        skip_nhwc = sflat[:rows_x].reshape(n, h, w, cp)
    else:
        skip_nhwc = jnp.pad(x, ((0, 0), (0, 0), (0, 0), (0, cp - in_f)))

    if stride == 2:
        slabs = [skip_nhwc[:, dy:dy + 2 * h1:2, dx:dx + 2 * w1:2, :]
                 .reshape(rows1, cp) for dy in (0, 1) for dx in (0, 1)]
    else:
        slabs = [skip_nhwc.reshape(rows1, cp)]        # single skip ref (no 4x DMA)
    slabs = [jnp.pad(s, ((0, rows1_pad - rows1), (0, 0))) for s in slabs]

    # --- conv2 + BN2 + ReLU, fused with skip (max-pool) + add + final ReLU --
    p2, _ = _im2col_3x3(r1_nhwc, 1)                   # bf16 patches
    p2 = jnp.pad(p2, ((0, rows1_pad - rows1), (0, 0)))
    y2, st2 = _conv_stats(p2, _flatten_w3x3(params["w2"], cp),
                          _row_vec(params["b2"], cp), rows1)
    out = _bn_relu_add(y2, st2, _row_vec(params["g2"], cp),
                       _row_vec(params["be2"], cp), slabs, rows1)

    out_nhwc = out[:rows1, :out_f].reshape(n, h1, w1, out_f)
    return jnp.transpose(out_nhwc, (0, 3, 1, 2))      # back to NCHW


# ---------------------------------------------------------------------------
# Pure-JAX reference (mirrors the PyTorch forward in training mode)
# ---------------------------------------------------------------------------
def _ref_forward(x, params, in_f, out_f, stride):
    def conv(inp, wgt, bias, s, pad):
        y = jax.lax.conv_general_dilated(
            inp, wgt, (s, s), ((pad, pad), (pad, pad)),
            dimension_numbers=("NCHW", "OIHW", "NCHW"))
        return y + bias[None, :, None, None]

    def bn(y, g, be):
        mu = jnp.mean(y, axis=(0, 2, 3), keepdims=True)
        var = jnp.mean((y - mu) ** 2, axis=(0, 2, 3), keepdims=True)
        return ((y - mu) * jax.lax.rsqrt(var + EPS)
                * g[None, :, None, None] + be[None, :, None, None])

    r = jax.nn.relu(bn(conv(x, params["w1"], params["b1"], stride, 1),
                       params["g1"], params["be1"]))
    r = jax.nn.relu(bn(conv(r, params["w2"], params["b2"], 1, 1),
                       params["g2"], params["be2"]))
    sk = x
    if in_f != out_f:
        sk = conv(sk, params["wfit"], params["bfit"], 1, 0)
    if stride == 2:
        sk = jax.lax.reduce_window(sk, -jnp.inf, jax.lax.max,
                                   (1, 1, 2, 2), (1, 1, 2, 2), "VALID")
    return jax.nn.relu(r + sk)


# ---------------------------------------------------------------------------
# Deterministic synthetic parameter init (shapes per ResBlock.__init__)
# ---------------------------------------------------------------------------
def init_params(key, in_f, out_f):
    ks = jax.random.split(key, 10)
    p = dict(
        w1=0.1 * jax.random.normal(ks[0], (out_f, in_f, 3, 3), jnp.float32),
        b1=0.1 * jax.random.normal(ks[1], (out_f,), jnp.float32),
        g1=1.0 + 0.1 * jax.random.normal(ks[2], (out_f,), jnp.float32),
        be1=0.1 * jax.random.normal(ks[3], (out_f,), jnp.float32),
        w2=0.1 * jax.random.normal(ks[4], (out_f, out_f, 3, 3), jnp.float32),
        b2=0.1 * jax.random.normal(ks[5], (out_f,), jnp.float32),
        g2=1.0 + 0.1 * jax.random.normal(ks[6], (out_f,), jnp.float32),
        be2=0.1 * jax.random.normal(ks[7], (out_f,), jnp.float32),
    )
    if in_f != out_f:
        p["wfit"] = 0.1 * jax.random.normal(ks[8], (out_f, in_f, 1, 1), jnp.float32)
        p["bfit"] = 0.1 * jax.random.normal(ks[9], (out_f,), jnp.float32)
    return p


if __name__ == "__main__":
    key = jax.random.PRNGKey(0)
    # Cover both branches: identity skip (stride=1, in==out) and
    # fit_conv + 2x2 max-pool skip (stride=2, in!=out).
    for cfg_i, (in_f, out_f, stride) in enumerate([(4, 4, 1), (4, 8, 2)]):
        kx, kp = jax.random.split(jax.random.fold_in(key, cfg_i))
        x = jax.random.normal(kx, (2, in_f, 16, 16), jnp.float32)
        params = init_params(kp, in_f, out_f)

        out = jax.block_until_ready(
            res_block_forward(x, params, in_f=in_f, out_f=out_f, stride=stride))
        ref = jax.block_until_ready(
            _ref_forward(x, params, in_f, out_f, stride))

        assert out.shape == ref.shape, (out.shape, ref.shape)
        # tolerance accounts for bf16 MXU operands / bf16 intermediate storage
        np.testing.assert_allclose(np.asarray(out), np.asarray(ref),
                                   atol=3e-2, rtol=3e-2)
    print("KERNEL_OK")
</pallas_src>

<mosaic_0001>
module attributes {stable_mosaic.version = 11 : i64} {
  func.func @_matmul_stats_kernel(%arg0: i32, %arg1: memref<256x36xbf16, #tpu.memory_space<vmem>>, %arg2: memref<36x128xbf16, #tpu.memory_space<vmem>>, %arg3: memref<1x128xf32, #tpu.memory_space<vmem>>, %arg4: memref<256x128xf32, #tpu.memory_space<vmem>>, %arg5: memref<2x128xf32, #tpu.memory_space<vmem>>) attributes {dimension_semantics = [#tpu.dimension_semantics<arbitrary>], iteration_bounds = array<i64: 2>, scalar_prefetch = 0 : i64, scratch_operands = 0 : i64, tpu.core_type = #tpu.core_type<tc>, window_params = [{transform_indices = @transform_0, window_bounds = array<i64: 256, 36>}, {pipeline_mode = #tpu.pipeline_mode<synchronous>, transform_indices = @transform_1, window_bounds = array<i64: 36, 128>}, {pipeline_mode = #tpu.pipeline_mode<synchronous>, transform_indices = @transform_2, window_bounds = array<i64: 1, 128>}, {transform_indices = @transform_3, window_bounds = array<i64: 256, 128>}, {pipeline_mode = #tpu.pipeline_mode<synchronous>, transform_indices = @transform_4, window_bounds = array<i64: 2, 128>}]} {
    %c0 = arith.constant 0 : index
    %c0_0 = arith.constant 0 : index
    %0 = vector.load %arg1[%c0, %c0_0] : memref<256x36xbf16, #tpu.memory_space<vmem>>, vector<256x36xbf16>
    %c0_1 = arith.constant 0 : index
    %c0_2 = arith.constant 0 : index
    %1 = vector.load %arg2[%c0_1, %c0_2] : memref<36x128xbf16, #tpu.memory_space<vmem>>, vector<36x128xbf16>
    %cst = arith.constant dense<0.000000e+00> : vector<256x128xf32>
    %2 = tpu.matmul %0, %1, %cst {dimension_numbers = #tpu.dot_dimension_numbers<[1], [0], [0], [1], [0, 0, 1, 1], [], []>} : vector<256x36xbf16>, vector<36x128xbf16>, vector<256x128xf32> -> vector<256x128xf32>
    %c0_3 = arith.constant 0 : index
    %c0_4 = arith.constant 0 : index
    %3 = vector.load %arg3[%c0_3, %c0_4] : memref<1x128xf32, #tpu.memory_space<vmem>>, vector<1x128xf32>
    %4 = vector.broadcast %3 : vector<1x128xf32> to vector<256x128xf32>
    %5 = arith.addf %2, %4 : vector<256x128xf32>
    %c0_5 = arith.constant 0 : index
    %c0_6 = arith.constant 0 : index
    %6 = vector.load %arg4[%c0_5, %c0_6] : memref<256x128xf32, #tpu.memory_space<vmem>>, vector<256x128xf32>
    tpu.vector_store %arg4[%c0_5, %c0_6], %5 {strides = array<i32>} : memref<256x128xf32, #tpu.memory_space<vmem>>, vector<256x128xf32>,
    %c256_i32 = arith.constant 256 : i32
    %7 = arith.muli %arg0, %c256_i32 : i32
    %8 = tpu.iota {dimensions = array<i32: 0>} : vector<256x128xi32>
    %9 = vector.broadcast %7 : i32 to vector<256x128xi32>
    %10 = arith.addi %9, %8 : vector<256x128xi32>
    %c512_i32 = arith.constant 512 : i32
    %11 = vector.broadcast %c512_i32 : i32 to vector<256x128xi32>
    %12 = arith.cmpi slt, %10, %11 : vector<256x128xi32>
    %cst_7 = arith.constant 0.000000e+00 : f32
    %13 = vector.broadcast %cst_7 : f32 to vector<256x128xf32>
    %14 = arith.select %12, %5, %13 : vector<256x128xi1>, vector<256x128xf32>
    %cst_8 = arith.constant dense<0.000000e+00> : vector<128xf32>
    %15 = vector.multi_reduction <add>, %14, %cst_8 [0] : vector<256x128xf32> to vector<128xf32>
    %16 = vector.shape_cast %15 : vector<128xf32> to vector<1x128xf32>
    %17 = arith.mulf %14, %14 : vector<256x128xf32>
    %cst_9 = arith.constant dense<0.000000e+00> : vector<128xf32>
    %18 = vector.multi_reduction <add>, %17, %cst_9 [0] : vector<256x128xf32> to vector<128xf32>
    %19 = vector.shape_cast %18 : vector<128xf32> to vector<1x128xf32>
    %20 = tpu.concatenate %16, %19 in 0 : vector<1x128xf32>, vector<1x128xf32> -> vector<2x128xf32>
    %c0_i32 = arith.constant 0 : i32
    %21 = arith.cmpi eq, %arg0, %c0_i32 : i32
    %22 = arith.extui %21 : i1 to i32
    %c0_i32_10 = arith.constant 0 : i32
    %23 = arith.cmpi ne, %22, %c0_i32_10 : i32
    scf.if %23 {
      %cst_15 = arith.constant 0.000000e+00 : f32
      %27 = vector.broadcast %cst_15 : f32 to vector<2x128xf32>
      %c0_16 = arith.constant 0 : index
      %c0_17 = arith.constant 0 : index
      %28 = vector.load %arg5[%c0_16, %c0_17] : memref<2x128xf32, #tpu.memory_space<vmem>>, vector<2x128xf32>
      tpu.vector_store %arg5[%c0_16, %c0_17], %27 {strides = array<i32>} : memref<2x128xf32, #tpu.memory_space<vmem>>, vector<2x128xf32>,
    } else {
    }
    %c0_11 = arith.constant 0 : index
    %c0_12 = arith.constant 0 : index
    %24 = vector.load %arg5[%c0_11, %c0_12] : memref<2x128xf32, #tpu.memory_space<vmem>>, vector<2x128xf32>
    %25 = arith.addf %24, %20 : vector<2x128xf32>
    %c0_13 = arith.constant 0 : index
    %c0_14 = arith.constant 0 : index
    %26 = vector.load %arg5[%c0_13, %c0_14] : memref<2x128xf32, #tpu.memory_space<vmem>>, vector<2x128xf32>
    tpu.vector_store %arg5[%c0_13, %c0_14], %25 {strides = array<i32>} : memref<2x128xf32, #tpu.memory_space<vmem>>, vector<2x128xf32>,
    return
  }
  func.func @transform_0(%arg0: i32) -> (i32, i32) {
    %c0_i32 = arith.constant 0 : i32
    %c0_i32_0 = arith.constant 0 : i32
    return %arg0, %c0_i32 : i32, i32
  }
  func.func @transform_1(%arg0: i32) -> (i32, i32) {
    %c0_i32 = arith.constant 0 : i32
    %c0_i32_0 = arith.constant 0 : i32
    %c0_i32_1 = arith.constant 0 : i32
    return %c0_i32, %c0_i32_0 : i32, i32
  }
  func.func @transform_2(%arg0: i32) -> (i32, i32) {
    %c0_i32 = arith.constant 0 : i32
    %c0_i32_0 = arith.constant 0 : i32
    %c0_i32_1 = arith.constant 0 : i32
    return %c0_i32, %c0_i32_0 : i32, i32
  }
  func.func @transform_3(%arg0: i32) -> (i32, i32) {
    %c0_i32 = arith.constant 0 : i32
    %c0_i32_0 = arith.constant 0 : i32
    return %arg0, %c0_i32 : i32, i32
  }
  func.func @transform_4(%arg0: i32) -> (i32, i32) {
    %c0_i32 = arith.constant 0 : i32
    %c0_i32_0 = arith.constant 0 : i32
    %c0_i32_1 = arith.constant 0 : i32
    return %c0_i32, %c0_i32_0 : i32, i32
  }
}

module attributes {stable_mosaic.version = 11 : i64} {
  func.func @_bn_relu_kernel(%arg0: i32, %arg1: memref<256x128xf32, #tpu.memory_space<vmem>>, %arg2: memref<2x128xf32, #tpu.memory_space<vmem>>, %arg3: memref<1x128xf32, #tpu.memory_space<vmem>>, %arg4: memref<1x128xf32, #tpu.memory_space<vmem>>, %arg5: memref<256x128xbf16, #tpu.memory_space<vmem>>) attributes {dimension_semantics = [#tpu.dimension_semantics<parallel>], iteration_bounds = array<i64: 2>, scalar_prefetch = 0 : i64, scratch_operands = 0 : i64, tpu.core_type = #tpu.core_type<tc>, window_params = [{transform_indices = @transform_0, window_bounds = array<i64: 256, 128>}, {pipeline_mode = #tpu.pipeline_mode<synchronous>, transform_indices = @transform_1, window_bounds = array<i64: 2, 128>}, {pipeline_mode = #tpu.pipeline_mode<synchronous>, transform_indices = @transform_2, window_bounds = array<i64: 1, 128>}, {pipeline_mode = #tpu.pipeline_mode<synchronous>, transform_indices = @transform_3, window_bounds = array<i64: 1, 128>}, {transform_indices = @transform_4, window_bounds = array<i64: 256, 128>}]} {
    %c0 = arith.constant 0 : index
    %c0_0 = arith.constant 0 : index
    %0 = vector.load %arg1[%c0, %c0_0] : memref<256x128xf32, #tpu.memory_space<vmem>>, vector<256x128xf32>
    %c0_1 = arith.constant 0 : index
    %c0_2 = arith.constant 0 : index
    %1 = vector.load %arg2[%c0_1, %c0_2] : memref<2x128xf32, #tpu.memory_space<vmem>>, vector<2x128xf32>
    %c0_3 = arith.constant 0 : index
    %c0_4 = arith.constant 0 : index
    %2 = vector.load %arg3[%c0_3, %c0_4] : memref<1x128xf32, #tpu.memory_space<vmem>>, vector<1x128xf32>
    %c0_5 = arith.constant 0 : index
    %c0_6 = arith.constant 0 : index
    %3 = vector.load %arg4[%c0_5, %c0_6] : memref<1x128xf32, #tpu.memory_space<vmem>>, vector<1x128xf32>
    %4 = vector.extract_strided_slice %1 {offsets = [0, 0], sizes = [1, 128], strides = [1, 1]} : vector<2x128xf32> to vector<1x128xf32>
    %cst = arith.constant 0.001953125 : f32
    %5 = vector.broadcast %cst : f32 to vector<1x128xf32>
    %6 = arith.mulf %4, %5 : vector<1x128xf32>
    %7 = vector.extract_strided_slice %1 {offsets = [1, 0], sizes = [1, 128], strides = [1, 1]} : vector<2x128xf32> to vector<1x128xf32>
    %cst_7 = arith.constant 0.001953125 : f32
    %8 = vector.broadcast %cst_7 : f32 to vector<1x128xf32>
    %9 = arith.mulf %7, %8 : vector<1x128xf32>
    %10 = arith.mulf %6, %6 : vector<1x128xf32>
    %11 = arith.subf %9, %10 : vector<1x128xf32>
    %cst_8 = arith.constant 9.99999974E-6 : f32
    %12 = vector.broadcast %cst_8 : f32 to vector<1x128xf32>
    %13 = arith.addf %11, %12 : vector<1x128xf32>
    %14 = math.rsqrt %13 : vector<1x128xf32>
    %15 = arith.mulf %14, %2 : vector<1x128xf32>
    %16 = arith.mulf %6, %15 : vector<1x128xf32>
    %17 = arith.subf %3, %16 : vector<1x128xf32>
    %18 = vector.broadcast %15 : vector<1x128xf32> to vector<256x128xf32>
    %19 = arith.mulf %0, %18 : vector<256x128xf32>
    %20 = vector.broadcast %17 : vector<1x128xf32> to vector<256x128xf32>
    %21 = arith.addf %19, %20 : vector<256x128xf32>
    %cst_9 = arith.constant 0.000000e+00 : f32
    %22 = vector.broadcast %cst_9 : f32 to vector<256x128xf32>
    %23 = arith.maximumf %21, %22 : vector<256x128xf32>
    %24 = arith.truncf %23 : vector<256x128xf32> to vector<256x128xbf16>
    %c0_10 = arith.constant 0 : index
    %c0_11 = arith.constant 0 : index
    %25 = vector.load %arg5[%c0_10, %c0_11] : memref<256x128xbf16, #tpu.memory_space<vmem>>, vector<256x128xbf16>
    tpu.vector_store %arg5[%c0_10, %c0_11], %24 {strides = array<i32>} : memref<256x128xbf16, #tpu.memory_space<vmem>>, vector<256x128xbf16>,
    return
  }
  func.func @transform_0(%arg0: i32) -> (i32, i32) {
    %c0_i32 = arith.constant 0 : i32
    %c0_i32_0 = arith.constant 0 : i32
    return %arg0, %c0_i32 : i32, i32
  }
  func.func @transform_1(%arg0: i32) -> (i32, i32) {
    %c0_i32 = arith.constant 0 : i32
    %c0_i32_0 = arith.constant 0 : i32
    %c0_i32_1 = arith.constant 0 : i32
    return %c0_i32, %c0_i32_0 : i32, i32
  }
  func.func @transform_2(%arg0: i32) -> (i32, i32) {
    %c0_i32 = arith.constant 0 : i32
    %c0_i32_0 = arith.constant 0 : i32
    %c0_i32_1 = arith.constant 0 : i32
    return %c0_i32, %c0_i32_0 : i32, i32
  }
  func.func @transform_3(%arg0: i32) -> (i32, i32) {
    %c0_i32 = arith.constant 0 : i32
    %c0_i32_0 = arith.constant 0 : i32
    %c0_i32_1 = arith.constant 0 : i32
    return %c0_i32, %c0_i32_0 : i32, i32
  }
  func.func @transform_4(%arg0: i32) -> (i32, i32) {
    %c0_i32 = arith.constant 0 : i32
    %c0_i32_0 = arith.constant 0 : i32
    return %arg0, %c0_i32 : i32, i32
  }
}

module attributes {stable_mosaic.version = 11 : i64} {
  func.func @_bn_relu_add_kernel(%arg0: i32, %arg1: memref<256x128xf32, #tpu.memory_space<vmem>>, %arg2: memref<2x128xf32, #tpu.memory_space<vmem>>, %arg3: memref<1x128xf32, #tpu.memory_space<vmem>>, %arg4: memref<1x128xf32, #tpu.memory_space<vmem>>, %arg5: memref<256x128xf32, #tpu.memory_space<vmem>>, %arg6: memref<256x128xf32, #tpu.memory_space<vmem>>) attributes {dimension_semantics = [#tpu.dimension_semantics<parallel>], iteration_bounds = array<i64: 2>, scalar_prefetch = 0 : i64, scratch_operands = 0 : i64, tpu.core_type = #tpu.core_type<tc>, window_params = [{transform_indices = @transform_0, window_bounds = array<i64: 256, 128>}, {pipeline_mode = #tpu.pipeline_mode<synchronous>, transform_indices = @transform_1, window_bounds = array<i64: 2, 128>}, {pipeline_mode = #tpu.pipeline_mode<synchronous>, transform_indices = @transform_2, window_bounds = array<i64: 1, 128>}, {pipeline_mode = #tpu.pipeline_mode<synchronous>, transform_indices = @transform_3, window_bounds = array<i64: 1, 128>}, {transform_indices = @transform_4, window_bounds = array<i64: 256, 128>}, {transform_indices = @transform_5, window_bounds = array<i64: 256, 128>}]} {
    %c0 = arith.constant 0 : index
    %c0_0 = arith.constant 0 : index
    %0 = vector.load %arg1[%c0, %c0_0] : memref<256x128xf32, #tpu.memory_space<vmem>>, vector<256x128xf32>
    %c0_1 = arith.constant 0 : index
    %c0_2 = arith.constant 0 : index
    %1 = vector.load %arg2[%c0_1, %c0_2] : memref<2x128xf32, #tpu.memory_space<vmem>>, vector<2x128xf32>
    %c0_3 = arith.constant 0 : index
    %c0_4 = arith.constant 0 : index
    %2 = vector.load %arg3[%c0_3, %c0_4] : memref<1x128xf32, #tpu.memory_space<vmem>>, vector<1x128xf32>
    %c0_5 = arith.constant 0 : index
    %c0_6 = arith.constant 0 : index
    %3 = vector.load %arg4[%c0_5, %c0_6] : memref<1x128xf32, #tpu.memory_space<vmem>>, vector<1x128xf32>
    %4 = vector.extract_strided_slice %1 {offsets = [0, 0], sizes = [1, 128], strides = [1, 1]} : vector<2x128xf32> to vector<1x128xf32>
    %cst = arith.constant 0.001953125 : f32
    %5 = vector.broadcast %cst : f32 to vector<1x128xf32>
    %6 = arith.mulf %4, %5 : vector<1x128xf32>
    %7 = vector.extract_strided_slice %1 {offsets = [1, 0], sizes = [1, 128], strides = [1, 1]} : vector<2x128xf32> to vector<1x128xf32>
    %cst_7 = arith.constant 0.001953125 : f32
    %8 = vector.broadcast %cst_7 : f32 to vector<1x128xf32>
    %9 = arith.mulf %7, %8 : vector<1x128xf32>
    %10 = arith.mulf %6, %6 : vector<1x128xf32>
    %11 = arith.subf %9, %10 : vector<1x128xf32>
    %cst_8 = arith.constant 9.99999974E-6 : f32
    %12 = vector.broadcast %cst_8 : f32 to vector<1x128xf32>
    %13 = arith.addf %11, %12 : vector<1x128xf32>
    %14 = math.rsqrt %13 : vector<1x128xf32>
    %15 = arith.mulf %14, %2 : vector<1x128xf32>
    %16 = arith.mulf %6, %15 : vector<1x128xf32>
    %17 = arith.subf %3, %16 : vector<1x128xf32>
    %18 = vector.broadcast %15 : vector<1x128xf32> to vector<256x128xf32>
    %19 = arith.mulf %0, %18 : vector<256x128xf32>
    %20 = vector.broadcast %17 : vector<1x128xf32> to vector<256x128xf32>
    %21 = arith.addf %19, %20 : vector<256x128xf32>
    %cst_9 = arith.constant 0.000000e+00 : f32
    %22 = vector.broadcast %cst_9 : f32 to vector<256x128xf32>
    %23 = arith.maximumf %21, %22 : vector<256x128xf32>
    %c0_10 = arith.constant 0 : index
    %c0_11 = arith.constant 0 : index
    %24 = vector.load %arg5[%c0_10, %c0_11] : memref<256x128xf32, #tpu.memory_space<vmem>>, vector<256x128xf32>
    %25 = arith.addf %23, %24 : vector<256x128xf32>
    %cst_12 = arith.constant 0.000000e+00 : f32
    %26 = vector.broadcast %cst_12 : f32 to vector<256x128xf32>
    %27 = arith.maximumf %25, %26 : vector<256x128xf32>
    %c0_13 = arith.constant 0 : index
    %c0_14 = arith.constant 0 : index
    %28 = vector.load %arg6[%c0_13, %c0_14] : memref<256x128xf32, #tpu.memory_space<vmem>>, vector<256x128xf32>
    tpu.vector_store %arg6[%c0_13, %c0_14], %27 {strides = array<i32>} : memref<256x128xf32, #tpu.memory_space<vmem>>, vector<256x128xf32>,
    return
  }
  func.func @transform_0(%arg0: i32) -> (i32, i32) {
    %c0_i32 = arith.constant 0 : i32
    %c0_i32_0 = arith.constant 0 : i32
    return %arg0, %c0_i32 : i32, i32
  }
  func.func @transform_1(%arg0: i32) -> (i32, i32) {
    %c0_i32 = arith.constant 0 : i32
    %c0_i32_0 = arith.constant 0 : i32
    %c0_i32_1 = arith.constant 0 : i32
    return %c0_i32, %c0_i32_0 : i32, i32
  }
  func.func @transform_2(%arg0: i32) -> (i32, i32) {
    %c0_i32 = arith.constant 0 : i32
    %c0_i32_0 = arith.constant 0 : i32
    %c0_i32_1 = arith.constant 0 : i32
    return %c0_i32, %c0_i32_0 : i32, i32
  }
  func.func @transform_3(%arg0: i32) -> (i32, i32) {
    %c0_i32 = arith.constant 0 : i32
    %c0_i32_0 = arith.constant 0 : i32
    %c0_i32_1 = arith.constant 0 : i32
    return %c0_i32, %c0_i32_0 : i32, i32
  }
  func.func @transform_4(%arg0: i32) -> (i32, i32) {
    %c0_i32 = arith.constant 0 : i32
    %c0_i32_0 = arith.constant 0 : i32
    return %arg0, %c0_i32 : i32, i32
  }
  func.func @transform_5(%arg0: i32) -> (i32, i32) {
    %c0_i32 = arith.constant 0 : i32
    %c0_i32_0 = arith.constant 0 : i32
    return %arg0, %c0_i32 : i32, i32
  }
}

</mosaic_0001>

<llo_original>
// kernel: res_block_forward.5
$region0: #{res_block_forward.5}
  #allocation0 [shape = 'u32[]', space=smem, size = 0x4, offset = 0x4, fixed_abs, tag = 'smem constant byte address 0x4 - core index']
  #allocation1 [shape = 'u32[144,128]{1,0:T(1,128)}', space=vmem, size = 0x12000, scoped, tag = 'internal scratch']
  %s0 = inlined_call_operand.vmem [shape: f32[512,128], index: 0, kind: input, shape index: {}]
  %s1 = inlined_call_operand.vmem [shape: f32[2,128], index: 1, kind: input, shape index: {}]
  %s2 = inlined_call_operand.vmem [shape: f32[1,128], index: 2, kind: input, shape index: {}]
  %s3 = inlined_call_operand.vmem [shape: f32[1,128], index: 3, kind: input, shape index: {}]
  %s4 = inlined_call_operand.vmem [shape: bf16[512,128], index: 4, kind: output, shape index: {}]
  %s5 = sld [smem:[#allocation0]]
  $region49: #{res_block_forward.5} parent=0
    _
  %s7 = ssub.s32 1, %s5
  %s8 = scalar_select 0, %s7, %s5
  loop: start=0, step=1, limit=4
  $region2: #{res_block_forward.5} parent=0 // loop_pre_header
    _
  $region3: #{res_block_forward.5} parent=0 // loop_header
    %s10 = sphi 0, %s14
    %p11 = scmp.ge.s32.totalorder %s10, 4
    %s20 = sphi 0, %s22
    %s23 = sphi 0, %s20
    %s24 = sphi 0, %s23
    %s40 = sphi 0, %s24
    %s44 = sphi 0, %s44
    %s46 = sphi 0, %s44
    %s47 = sphi 0, %s46
    %s61 = sphi 0, %s47
    %s65 = sphi 0, %s65
    %s67 = sphi 0, %s65
    %s68 = sphi 0, %s67
    %s82 = sphi 0, %s68
    %s86 = sphi 0, %s86
    %s88 = sphi 0, %s86
    %s89 = sphi 0, %s88
    %s103 = sphi 0, %s89
    %s109 = sphi 0, %s111
    %s112 = sphi 0, %s109
    %s113 = sphi 0, %s112
    %s129 = sphi 0, %s113
  $region4: #{res_block_forward.5} parent=0 // loop_header_branch
    %13 = sbr.rel (%p11) target = $region8
  $region5: #{res_block_forward.5} parent=0 // loop_body
    %s15 = ssub.s32 %s10, 1
    %s16 = ssub.s32 %s10, 2
    %s17 = sadd.s32 %s10, 1
    %s18 = ssub.s32 %s10, %s17
    %p19 = scmp.eq.s32.totalorder %s18, 0
    %s21 = sadd.s32 %s20, 1
    %s22 = scalar_select %p19, %s20, %s21
    %p25 = pneg %p19
    %p26 = scmp.eq.s32.totalorder %s10, 1
    %p27 = por %p25, %p26
    %p28 = scmp.ne.s32.totalorder %s20, %s23
    %p29 = scmp.eq.s32.totalorder %s10, 0
    %p30 = por %p28, %p29
    %p31 = scmp.ne.s32.totalorder %s20, %s23
    %p32 = scmp.eq.s32.totalorder %s15, 1
    %p33 = por %p31, %p32
    %p34 = scmp.ne.s32.totalorder %s23, %s24
    %p35 = scmp.eq.s32.totalorder %s15, 0
    %p36 = por %p34, %p35
    %p37 = scmp.ne.s32.totalorder %s23, %s24
    %p38 = scmp.eq.s32.totalorder %s16, 1
    %p39 = por %p37, %p38
    %p41 = scmp.ne.s32.totalorder %s24, %s40
    %p42 = scmp.eq.s32.totalorder %s16, 0
    %p43 = por %p41, %p42
    %s45 = sadd.s32 %s44, 1
    %p48 = scmp.eq.s32.totalorder %s10, 1
    %p49 = scmp.ne.s32.totalorder %s44, %s46
    %p50 = scmp.eq.s32.totalorder %s10, 0
    %p51 = por %p49, %p50
    %p52 = scmp.ne.s32.totalorder %s44, %s46
    %p53 = scmp.eq.s32.totalorder %s15, 1
    %p54 = por %p52, %p53
    %p55 = scmp.ne.s32.totalorder %s46, %s47
    %p56 = scmp.eq.s32.totalorder %s15, 0
    %p57 = por %p55, %p56
    %p58 = scmp.ne.s32.totalorder %s46, %s47
    %p59 = scmp.eq.s32.totalorder %s16, 1
    %p60 = por %p58, %p59
    %p62 = scmp.ne.s32.totalorder %s47, %s61
    %p63 = scmp.eq.s32.totalorder %s16, 0
    %p64 = por %p62, %p63
    %s66 = sadd.s32 %s65, 1
    %p69 = scmp.eq.s32.totalorder %s10, 1
    %p70 = scmp.ne.s32.totalorder %s65, %s67
    %p71 = scmp.eq.s32.totalorder %s10, 0
    %p72 = por %p70, %p71
    %p73 = scmp.ne.s32.totalorder %s65, %s67
    %p74 = scmp.eq.s32.totalorder %s15, 1
    %p75 = por %p73, %p74
    %p76 = scmp.ne.s32.totalorder %s67, %s68
    %p77 = scmp.eq.s32.totalorder %s15, 0
    %p78 = por %p76, %p77
    %p79 = scmp.ne.s32.totalorder %s67, %s68
    %p80 = scmp.eq.s32.totalorder %s16, 1
    %p81 = por %p79, %p80
    %p83 = scmp.ne.s32.totalorder %s68, %s82
    %p84 = scmp.eq.s32.totalorder %s16, 0
    %p85 = por %p83, %p84
    %s87 = sadd.s32 %s86, 1
    %p90 = scmp.eq.s32.totalorder %s10, 1
    %p91 = scmp.ne.s32.totalorder %s86, %s88
    %p92 = scmp.eq.s32.totalorder %s10, 0
    %p93 = por %p91, %p92
    %p94 = scmp.ne.s32.totalorder %s86, %s88
    %p95 = scmp.eq.s32.totalorder %s15, 1
    %p96 = por %p94, %p95
    %p97 = scmp.ne.s32.totalorder %s88, %s89
    %p98 = scmp.eq.s32.totalorder %s15, 0
    %p99 = por %p97, %p98
    %p100 = scmp.ne.s32.totalorder %s88, %s89
    %p101 = scmp.eq.s32.totalorder %s16, 1
    %p102 = por %p100, %p101
    %p104 = scmp.ne.s32.totalorder %s89, %s103
    %p105 = scmp.eq.s32.totalorder %s16, 0
    %p106 = por %p104, %p105
    %s107 = ssub.s32 %s10, %s17
    %p108 = scmp.eq.s32.totalorder %s107, 0
    %s110 = sadd.s32 %s109, 1
    %s111 = scalar_select %p108, %s109, %s110
    %p114 = pneg %p108
    %p115 = scmp.eq.s32.totalorder %s10, 1
    %p116 = por %p114, %p115
    %p117 = scmp.ne.s32.totalorder %s109, %s112
    %p118 = scmp.eq.s32.totalorder %s10, 0
    %p119 = por %p117, %p118
    %p120 = scmp.ne.s32.totalorder %s109, %s112
    %p121 = scmp.eq.s32.totalorder %s15, 1
    %p122 = por %p120, %p121
    %p123 = scmp.ne.s32.totalorder %s112, %s113
    %p124 = scmp.eq.s32.totalorder %s15, 0
    %p125 = por %p123, %p124
    %p126 = scmp.ne.s32.totalorder %s112, %s113
    %p127 = scmp.eq.s32.totalorder %s16, 1
    %p128 = por %p126, %p127
    %p130 = scmp.ne.s32.totalorder %s113, %s129
    %p131 = scmp.eq.s32.totalorder %s16, 0
    %p132 = por %p130, %p131
    %p133 = scmp.le.s32.totalorder 1, %s10
    %p134 = scmp.lt.s32.totalorder %s10, 3
    %p135 = pnand %p133, %p134
    %p136 = pneg %p135
    // Predicated region
    $region9: #{res_block_forward.5} parent=5 // pred_check
      _
    $region10: #{res_block_forward.5} parent=5 // pred_check_branch
      %138 = sbr.rel (%p135) target = $region12
    $region11: #{res_block_forward.5} parent=5 // pred_region
      %s139 = ssub.s32 %s10, 1
      // Predicated region
      $region13: #{res_block_forward.5} parent=11 // pred_check
        %p140 = pneg %p57
      $region14: #{res_block_forward.5} parent=11 // pred_check_branch
        %142 = sbr.rel (%p140) target = $region16
      $region15: #{res_block_forward.5} parent=11 // pred_region
        _
      $region16: #{res_block_forward.5} parent=11 // pred_fallthru
        _
      // Predicated region
      $region17: #{res_block_forward.5} parent=11 // pred_check
        %p143 = pneg %p78
      $region18: #{res_block_forward.5} parent=11 // pred_check_branch
        %145 = sbr.rel (%p143) target = $region20
      $region19: #{res_block_forward.5} parent=11 // pred_region
        _
      $region20: #{res_block_forward.5} parent=11 // pred_fallthru
        _
      // Predicated region
      $region21: #{res_block_forward.5} parent=11 // pred_check
        %p146 = pneg %p99
      $region22: #{res_block_forward.5} parent=11 // pred_check_branch
        %148 = sbr.rel (%p146) target = $region24
      $region23: #{res_block_forward.5} parent=11 // pred_region
        _
      $region24: #{res_block_forward.5} parent=11 // pred_fallthru
        _
    $region12: #{res_block_forward.5} parent=5 // pred_fallthru
      _
    %p149 = scmp.lt.s32.totalorder %s10, 2
    // Predicated region
    $region25: #{res_block_forward.5} parent=5 // pred_check
      %p150 = pneg %p149
    $region26: #{res_block_forward.5} parent=5 // pred_check_branch
      %152 = sbr.rel (%p150) target = $region28
    $region27: #{res_block_forward.5} parent=5 // pred_region
      // Predicated region
      $region29: #{res_block_forward.5} parent=27 // pred_check
        %p153 = pneg %p30
      $region30: #{res_block_forward.5} parent=27 // pred_check_branch
        %155 = sbr.rel (%p153) target = $region32
      $region31: #{res_block_forward.5} parent=27 // pred_region
        %s156 = smul.u32 32, %s10
        %p157 = scmp.lt.s32.totalorder %s156, 63
        %s158 = scalar_select %p157, %s156, 63
        %s159 = smul.addr %s158, 8
        %s160 = scalar_lea.vmem %s0, %s159
        %s161 = smul.u32 32, %s10
      $region32: #{res_block_forward.5} parent=27 // pred_fallthru
        _
    $region28: #{res_block_forward.5} parent=5 // pred_fallthru
      _
    %p162 = scmp.le.s32.totalorder 1, %s10
    %p163 = scmp.lt.s32.totalorder %s10, 3
    %p164 = pnand %p162, %p163
    %p165 = pneg %p164
    // Predicated region
    $region33: #{res_block_forward.5} parent=5 // pred_check
      _
    $region34: #{res_block_forward.5} parent=5 // pred_check_branch
      %167 = sbr.rel (%p164) target = $region36
    $region35: #{res_block_forward.5} parent=5 // pred_region
      %s168 = ssub.s32 %s10, 1
      %s169 = smul.u32 32, %s15
      %p170 = scmp.lt.s32.totalorder %s169, 63
      %s171 = scalar_select %p170, %s169, 63
      %s172 = smul.addr %s171, 8
      %s173 = scalar_lea.vmem %s0, %s172
      %p174 = pneg %p36
      %p175 = pneg %p33
      %p176 = pneg %p57
      %p177 = pneg %p54
      %p178 = pneg %p78
      %p179 = pneg %p75
      %p180 = pneg %p99
      %p181 = pneg %p96
      %p182 = pneg %p125
      %p183 = pneg %p122
      %s184 = smul.u32 32, %s15
      %p185 = scmp.lt.s32.totalorder %s184, 63
      %s186 = scalar_select %p185, %s184, 63
      %s187 = smul.addr %s186, 4
      %s188 = scalar_lea.vmem %s4, %s187
      %s189 = smul.u32 32, %s15
      %p190 = scmp.lt.s32.totalorder %s189, 63
      %s191 = scalar_select %p190, %s189, 63
      %s192 = smul.addr %s191, 8
      %s193 = scalar_lea.vmem %s0, %s192
      %s194 = smul.u32 32, %s15
      %s195 = smul.u32 32, %s15
      %p196 = scmp.lt.s32.totalorder %s195, 63
      %s197 = scalar_select %p196, %s195, 63
      %s198 = smul.addr %s197, 4
      %s199 = scalar_lea.vmem %s4, %s198
      %s200 = smul.u32 32, %s15
      %v201 = vld [vmem:[%s193] sm:$0xff]
      %v202 = vld [vmem:[%s193 + $0x8] sm:$0xff]
      %v203 = vld [vmem:[%s193 + $0x10] sm:$0xff]
      %v204 = vld [vmem:[%s193 + $0x18] sm:$0xff]
      %v205 = vld [vmem:[%s193 + $0x20] sm:$0xff]
      %v206 = vld [vmem:[%s193 + $0x28] sm:$0xff]
      %v207 = vld [vmem:[%s193 + $0x30] sm:$0xff]
      %v208 = vld [vmem:[%s193 + $0x38] sm:$0xff]
      %v209 = vld [vmem:[%s193 + $0x40] sm:$0xff]
      %v210 = vld [vmem:[%s193 + $0x48] sm:$0xff]
      %v211 = vld [vmem:[%s193 + $0x50] sm:$0xff]
      %v212 = vld [vmem:[%s193 + $0x58] sm:$0xff]
      %v213 = vld [vmem:[%s193 + $0x60] sm:$0xff]
      %v214 = vld [vmem:[%s193 + $0x68] sm:$0xff]
      %v215 = vld [vmem:[%s193 + $0x70] sm:$0xff]
      %v216 = vld [vmem:[%s193 + $0x78] sm:$0xff]
      %v217 = vld [vmem:[%s193 + $0x80] sm:$0xff]
      %v218 = vld [vmem:[%s193 + $0x88] sm:$0xff]
      %v219 = vld [vmem:[%s193 + $0x90] sm:$0xff]
      %v220 = vld [vmem:[%s193 + $0x98] sm:$0xff]
      %v221 = vld [vmem:[%s193 + $0xa0] sm:$0xff]
      %v222 = vld [vmem:[%s193 + $0xa8] sm:$0xff]
      %v223 = vld [vmem:[%s193 + $0xb0] sm:$0xff]
      %v224 = vld [vmem:[%s193 + $0xb8] sm:$0xff]
      %v225 = vld [vmem:[%s193 + $0xc0] sm:$0xff]
      %v226 = vld [vmem:[%s193 + $0xc8] sm:$0xff]
      %v227 = vld [vmem:[%s193 + $0xd0] sm:$0xff]
      %v228 = vld [vmem:[%s193 + $0xd8] sm:$0xff]
      %v229 = vld [vmem:[%s193 + $0xe0] sm:$0xff]
      %v230 = vld [vmem:[%s193 + $0xe8] sm:$0xff]
      %v231 = vld [vmem:[%s193 + $0xf0] sm:$0xff]
      %v232 = vld [vmem:[%s193 + $0xf8] sm:$0xff]
      %v233 = vld [vmem:[%s1] sm:$0x3]
      %v234 = vld [vmem:[%s2] sm:$0x1]
      %v235 = vld [vmem:[%s3] sm:$0x1]
      %v236 = vmul.f32 %v233, 0.001953125
      %v237 = vmul.f32 %v236, %v236
      %v239 = vrot.slane %v237, 7
      %v241 = vsub.f32 %v236, %v239
      %v242 = vadd.f32 %v241, 1e-05
      %v243 = vrsqrt.pop %v242
      %v245 = vlaneseq
      %v246 = vshrl.u32 %v245, 7
      %v247 = vsub.s32 0, %v246
      %v248 = vrot.slane %v234, %v247
      %v250 = vmul.f32 %v243, %v248
      %v252 = vrot.slane %v250, 1
      %v254 = vmul.f32 %v236, %v252
      %v255 = vsub.f32 %v235, %v254
      %v256 = vlaneseq
      %v257 = vshrl.u32 %v256, 7
      %v258 = vsub.s32 1, %v257
      %v259 = vrot.slane %v250, %v258
      %v260 = vmul.f32 %v201, %v259
      %v261 = vmul.f32 %v202, %v259
      %v262 = vmul.f32 %v203, %v259
      %v263 = vmul.f32 %v204, %v259
      %v264 = vmul.f32 %v205, %v259
      %v265 = vmul.f32 %v206, %v259
      %v266 = vmul.f32 %v207, %v259
      %v267 = vmul.f32 %v208, %v259
      %v268 = vmul.f32 %v209, %v259
      %v269 = vmul.f32 %v210, %v259
      %v270 = vmul.f32 %v211, %v259
      %v271 = vmul.f32 %v212, %v259
      %v272 = vmul.f32 %v213, %v259
      %v273 = vmul.f32 %v214, %v259
      %v274 = vmul.f32 %v215, %v259
      %v275 = vmul.f32 %v216, %v259
      %v276 = vmul.f32 %v217, %v259
      %v277 = vmul.f32 %v218, %v259
      %v278 = vmul.f32 %v219, %v259
      %v279 = vmul.f32 %v220, %v259
      %v280 = vmul.f32 %v221, %v259
      %v281 = vmul.f32 %v222, %v259
      %v282 = vmul.f32 %v223, %v259
      %v283 = vmul.f32 %v224, %v259
      %v284 = vmul.f32 %v225, %v259
      %v285 = vmul.f32 %v226, %v259
      %v286 = vmul.f32 %v227, %v259
      %v287 = vmul.f32 %v228, %v259
      %v288 = vmul.f32 %v229, %v259
      %v289 = vmul.f32 %v230, %v259
      %v290 = vmul.f32 %v231, %v259
      %v291 = vmul.f32 %v232, %v259
      %v293 = vlaneseq
      %v294 = vshrl.u32 %v293, 7
      %v295 = vsub.s32 0, %v294
      %v296 = vrot.slane %v255, %v295
      %v298 = vadd.f32 %v260, %v296
      %v299 = vadd.f32 %v261, %v296
      %v300 = vadd.f32 %v262, %v296
      %v301 = vadd.f32 %v263, %v296
      %v302 = vadd.f32 %v264, %v296
      %v303 = vadd.f32 %v265, %v296
      %v304 = vadd.f32 %v266, %v296
      %v305 = vadd.f32 %v267, %v296
      %v306 = vadd.f32 %v268, %v296
      %v307 = vadd.f32 %v269, %v296
      %v308 = vadd.f32 %v270, %v296
      %v309 = vadd.f32 %v271, %v296
      %v310 = vadd.f32 %v272, %v296
      %v311 = vadd.f32 %v273, %v296
      %v312 = vadd.f32 %v274, %v296
      %v313 = vadd.f32 %v275, %v296
      %v314 = vadd.f32 %v276, %v296
      %v315 = vadd.f32 %v277, %v296
      %v316 = vadd.f32 %v278, %v296
      %v317 = vadd.f32 %v279, %v296
      %v318 = vadd.f32 %v280, %v296
      %v319 = vadd.f32 %v281, %v296
      %v320 = vadd.f32 %v282, %v296
      %v321 = vadd.f32 %v283, %v296
      %v322 = vadd.f32 %v284, %v296
      %v323 = vadd.f32 %v285, %v296
      %v324 = vadd.f32 %v286, %v296
      %v325 = vadd.f32 %v287, %v296
      %v326 = vadd.f32 %v288, %v296
      %v327 = vadd.f32 %v289, %v296
      %v328 = vadd.f32 %v290, %v296
      %v329 = vadd.f32 %v291, %v296
      %v330 = vmax.f32 %v298, 0.0
      %v331 = vmax.f32 %v299, 0.0
      %v332 = vmax.f32 %v300, 0.0
      %v333 = vmax.f32 %v301, 0.0
      %v334 = vmax.f32 %v302, 0.0
      %v335 = vmax.f32 %v303, 0.0
      %v336 = vmax.f32 %v304, 0.0
      %v337 = vmax.f32 %v305, 0.0
      %v338 = vmax.f32 %v306, 0.0
      %v339 = vmax.f32 %v307, 0.0
      %v340 = vmax.f32 %v308, 0.0
      %v341 = vmax.f32 %v309, 0.0
      %v342 = vmax.f32 %v310, 0.0
      %v343 = vmax.f32 %v311, 0.0
      %v344 = vmax.f32 %v312, 0.0
      %v345 = vmax.f32 %v313, 0.0
      %v346 = vmax.f32 %v314, 0.0
      %v347 = vmax.f32 %v315, 0.0
      %v348 = vmax.f32 %v316, 0.0
      %v349 = vmax.f32 %v317, 0.0
      %v350 = vmax.f32 %v318, 0.0
      %v351 = vmax.f32 %v319, 0.0
      %v352 = vmax.f32 %v320, 0.0
      %v353 = vmax.f32 %v321, 0.0
      %v354 = vmax.f32 %v322, 0.0
      %v355 = vmax.f32 %v323, 0.0
      %v356 = vmax.f32 %v324, 0.0
      %v357 = vmax.f32 %v325, 0.0
      %v358 = vmax.f32 %v326, 0.0
      %v359 = vmax.f32 %v327, 0.0
      %v360 = vmax.f32 %v328, 0.0
      %v361 = vmax.f32 %v329, 0.0
      %v362 = vpack.c.bf16 %v331, %v330
      %v363 = vpack.c.bf16 %v333, %v332
      %v364 = vpack.c.bf16 %v335, %v334
      %v365 = vpack.c.bf16 %v337, %v336
      %v366 = vpack.c.bf16 %v339, %v338
      %v367 = vpack.c.bf16 %v341, %v340
      %v368 = vpack.c.bf16 %v343, %v342
      %v369 = vpack.c.bf16 %v345, %v344
      %v370 = vpack.c.bf16 %v347, %v346
      %v371 = vpack.c.bf16 %v349, %v348
      %v372 = vpack.c.bf16 %v351, %v350
      %v373 = vpack.c.bf16 %v353, %v352
      %v374 = vpack.c.bf16 %v355, %v354
      %v375 = vpack.c.bf16 %v357, %v356
      %v376 = vpack.c.bf16 %v359, %v358
      %v377 = vpack.c.bf16 %v361, %v360
      %v394 = vunpack.c.l.b16 %v362
      %v395 = vunpack.c.h.b16 %v362
      %v396 = vunpack.c.l.b16 %v363
      %v397 = vunpack.c.h.b16 %v363
      %v398 = vunpack.c.l.b16 %v364
      %v399 = vunpack.c.h.b16 %v364
      %v400 = vunpack.c.l.b16 %v365
      %v401 = vunpack.c.h.b16 %v365
      %v402 = vunpack.c.l.b16 %v366
      %v403 = vunpack.c.h.b16 %v366
      %v404 = vunpack.c.l.b16 %v367
      %v405 = vunpack.c.h.b16 %v367
      %v406 = vunpack.c.l.b16 %v368
      %v407 = vunpack.c.h.b16 %v368
      %v408 = vunpack.c.l.b16 %v369
      %v409 = vunpack.c.h.b16 %v369
      %v410 = vunpack.c.l.b16 %v370
      %v411 = vunpack.c.h.b16 %v370
      %v412 = vunpack.c.l.b16 %v371
      %v413 = vunpack.c.h.b16 %v371
      %v414 = vunpack.c.l.b16 %v372
      %v415 = vunpack.c.h.b16 %v372
      %v416 = vunpack.c.l.b16 %v373
      %v417 = vunpack.c.h.b16 %v373
      %v418 = vunpack.c.l.b16 %v374
      %v419 = vunpack.c.h.b16 %v374
      %v420 = vunpack.c.l.b16 %v375
      %v421 = vunpack.c.h.b16 %v375
      %v422 = vunpack.c.l.b16 %v376
      %v423 = vunpack.c.h.b16 %v376
      %v424 = vunpack.c.l.b16 %v377
      %v425 = vunpack.c.h.b16 %v377
      %v426 = vpack.c.b16 %v394, %v394
      %v427 = vpack.c.b16 %v395, %v395
      %v428 = vpack.c.b16 %v396, %v396
      %v429 = vpack.c.b16 %v397, %v397
      %v430 = vpack.c.b16 %v398, %v398
      %v431 = vpack.c.b16 %v399, %v399
      %v432 = vpack.c.b16 %v400, %v400
      %v433 = vpack.c.b16 %v401, %v401
      %v434 = vpack.c.b16 %v402, %v402
      %v435 = vpack.c.b16 %v403, %v403
      %v436 = vpack.c.b16 %v404, %v404
      %v437 = vpack.c.b16 %v405, %v405
      %v438 = vpack.c.b16 %v406, %v406
      %v439 = vpack.c.b16 %v407, %v407
      %v440 = vpack.c.b16 %v408, %v408
      %v441 = vpack.c.b16 %v409, %v409
      %v442 = vpack.c.b16 %v410, %v410
      %v443 = vpack.c.b16 %v411, %v411
      %v444 = vpack.c.b16 %v412, %v412
      %v445 = vpack.c.b16 %v413, %v413
      %v446 = vpack.c.b16 %v414, %v414
      %v447 = vpack.c.b16 %v415, %v415
      %v448 = vpack.c.b16 %v416, %v416
      %v449 = vpack.c.b16 %v417, %v417
      %v450 = vpack.c.b16 %v418, %v418
      %v451 = vpack.c.b16 %v419, %v419
      %v452 = vpack.c.b16 %v420, %v420
      %v453 = vpack.c.b16 %v421, %v421
      %v454 = vpack.c.b16 %v422, %v422
      %v455 = vpack.c.b16 %v423, %v423
      %v456 = vpack.c.b16 %v424, %v424
      %v457 = vpack.c.b16 %v425, %v425
      %490 = vst [vmem:[%s199] sm:$0xf] %v426
      %491 = vst [vmem:[%s199 + $0x4] sm:$0xf] %v427
      %492 = vst [vmem:[%s199 + $0x8] sm:$0xf] %v428
      %493 = vst [vmem:[%s199 + $0xc] sm:$0xf] %v429
      %494 = vst [vmem:[%s199 + $0x10] sm:$0xf] %v430
      %495 = vst [vmem:[%s199 + $0x14] sm:$0xf] %v431
      %496 = vst [vmem:[%s199 + $0x18] sm:$0xf] %v432
      %497 = vst [vmem:[%s199 + $0x1c] sm:$0xf] %v433
      %498 = vst [vmem:[%s199 + $0x20] sm:$0xf] %v434
      %499 = vst [vmem:[%s199 + $0x24] sm:$0xf] %v435
      %500 = vst [vmem:[%s199 + $0x28] sm:$0xf] %v436
      %501 = vst [vmem:[%s199 + $0x2c] sm:$0xf] %v437
      %502 = vst [vmem:[%s199 + $0x30] sm:$0xf] %v438
      %503 = vst [vmem:[%s199 + $0x34] sm:$0xf] %v439
      %504 = vst [vmem:[%s199 + $0x38] sm:$0xf] %v440
      %505 = vst [vmem:[%s199 + $0x3c] sm:$0xf] %v441
      %506 = vst [vmem:[%s199 + $0x40] sm:$0xf] %v442
      %507 = vst [vmem:[%s199 + $0x44] sm:$0xf] %v443
      %508 = vst [vmem:[%s199 + $0x48] sm:$0xf] %v444
      %509 = vst [vmem:[%s199 + $0x4c] sm:$0xf] %v445
      %510 = vst [vmem:[%s199 + $0x50] sm:$0xf] %v446
      %511 = vst [vmem:[%s199 + $0x54] sm:$0xf] %v447
      %512 = vst [vmem:[%s199 + $0x58] sm:$0xf] %v448
      %513 = vst [vmem:[%s199 + $0x5c] sm:$0xf] %v449
      %514 = vst [vmem:[%s199 + $0x60] sm:$0xf] %v450
      %515 = vst [vmem:[%s199 + $0x64] sm:$0xf] %v451
      %516 = vst [vmem:[%s199 + $0x68] sm:$0xf] %v452
      %517 = vst [vmem:[%s199 + $0x6c] sm:$0xf] %v453
      %518 = vst [vmem:[%s199 + $0x70] sm:$0xf] %v454
      %519 = vst [vmem:[%s199 + $0x74] sm:$0xf] %v455
      %520 = vst [vmem:[%s199 + $0x78] sm:$0xf] %v456
      %521 = vst [vmem:[%s199 + $0x7c] sm:$0xf] %v457
      %s522 = smul.u32 32, %s15
      %p523 = scmp.lt.s32.totalorder %s522, 63
      %s524 = scalar_select %p523, %s522, 63
      %s525 = smul.addr %s524, 4
      %s526 = scalar_lea.vmem %s4, %s525
      // Predicated region
      $region37: #{res_block_forward.5} parent=35 // pred_check
        %p527 = pneg %p122
      $region38: #{res_block_forward.5} parent=35 // pred_check_branch
        %529 = sbr.rel (%p527) target = $region40
      $region39: #{res_block_forward.5} parent=35 // pred_region
        %s530 = smul.u32 32, %s15
      $region40: #{res_block_forward.5} parent=35 // pred_fallthru
        _
    $region36: #{res_block_forward.5} parent=5 // pred_fallthru
      _
    %p531 = scmp.le.s32.totalorder 2, %s10
    // Predicated region
    $region41: #{res_block_forward.5} parent=5 // pred_check
      %p532 = pneg %p531
    $region42: #{res_block_forward.5} parent=5 // pred_check_branch
      %534 = sbr.rel (%p532) target = $region44
    $region43: #{res_block_forward.5} parent=5 // pred_region
      %s535 = ssub.s32 %s10, 2
      // Predicated region
      $region45: #{res_block_forward.5} parent=43 // pred_check
        %p536 = pneg %p128
      $region46: #{res_block_forward.5} parent=43 // pred_check_branch
        %538 = sbr.rel (%p536) target = $region48
      $region47: #{res_block_forward.5} parent=43 // pred_region
        %s539 = smul.u32 32, %s16
        %p540 = scmp.lt.s32.totalorder %s539, 63
        %s541 = scalar_select %p540, %s539, 63
        %s542 = smul.addr %s541, 4
        %s543 = scalar_lea.vmem %s4, %s542
      $region48: #{res_block_forward.5} parent=43 // pred_fallthru
        _
    $region44: #{res_block_forward.5} parent=5 // pred_fallthru
      _
  $region6: #{res_block_forward.5} parent=0 // loop_footer
    %s14 = sadd.s32 1, %s10
  $region7: #{res_block_forward.5} parent=0 // loop_footer_branch
    %9 = sbr.rel target = $region3
  $region8: #{res_block_forward.5} parent=0 // loop_exit
    _

// kernel: res_block_forward.4
$region0: #{res_block_forward.4}
  #allocation0 [shape = 'u32[]', space=smem, size = 0x4, offset = 0x4, fixed_abs, tag = 'smem constant byte address 0x4 - core index']
  #allocation1 [shape = 'u32[144,128]{1,0:T(1,128)}', space=vmem, size = 0x12000, scoped, tag = 'internal scratch']
  %s0 = inlined_call_operand.vmem [shape: bf16[512,36], index: 0, kind: input, shape index: {}]
  %s1 = inlined_call_operand.vmem [shape: bf16[36,128], index: 1, kind: input, shape index: {}]
  %s2 = inlined_call_operand.vmem [shape: f32[1,128], index: 2, kind: input, shape index: {}]
  %s3 = inlined_call_operand.vmem [shape: f32[512,128], index: 3, kind: output, shape index: {0}]
  %s4 = inlined_call_operand.vmem [shape: f32[2,128], index: 4, kind: output, shape index: {1}]
  %5 = xla_tuple %s3, %s4
  %s6 = sld [smem:[#allocation0]]
  $region57: #{res_block_forward.4} parent=0
    _
  %s8 = ssub.s32 1, %s6
  %s9 = scalar_select 0, %s8, %s6
  loop: start=0, step=1, limit=4
  $region2: #{res_block_forward.4} parent=0 // loop_pre_header
    _
  $region3: #{res_block_forward.4} parent=0 // loop_header
    %s11 = sphi 0, %s15
    %p12 = scmp.ge.s32.totalorder %s11, 4
    %s21 = sphi 0, %s23
    %s24 = sphi 0, %s21
    %s25 = sphi 0, %s24
    %s41 = sphi 0, %s25
    %s45 = sphi 0, %s45
    %s47 = sphi 0, %s45
    %s48 = sphi 0, %s47
    %s62 = sphi 0, %s48
    %s66 = sphi 0, %s66
    %s68 = sphi 0, %s66
    %s69 = sphi 0, %s68
    %s83 = sphi 0, %s69
    %s89 = sphi 0, %s91
    %s92 = sphi 0, %s89
    %s93 = sphi 0, %s92
    %s109 = sphi 0, %s93
    %s113 = sphi 0, %s113
    %s115 = sphi 0, %s113
    %s116 = sphi 0, %s115
    %s130 = sphi 0, %s116
  $region4: #{res_block_forward.4} parent=0 // loop_header_branch
    %14 = sbr.rel (%p12) target = $region8
  $region5: #{res_block_forward.4} parent=0 // loop_body
    %s16 = ssub.s32 %s11, 1
    %s17 = ssub.s32 %s11, 2
    %s18 = sadd.s32 %s11, 1
    %s19 = ssub.s32 %s11, %s18
    %p20 = scmp.eq.s32.totalorder %s19, 0
    %s22 = sadd.s32 %s21, 1
    %s23 = scalar_select %p20, %s21, %s22
    %p26 = pneg %p20
    %p27 = scmp.eq.s32.totalorder %s11, 1
    %p28 = por %p26, %p27
    %p29 = scmp.ne.s32.totalorder %s21, %s24
    %p30 = scmp.eq.s32.totalorder %s11, 0
    %p31 = por %p29, %p30
    %p32 = scmp.ne.s32.totalorder %s21, %s24
    %p33 = scmp.eq.s32.totalorder %s16, 1
    %p34 = por %p32, %p33
    %p35 = scmp.ne.s32.totalorder %s24, %s25
    %p36 = scmp.eq.s32.totalorder %s16, 0
    %p37 = por %p35, %p36
    %p38 = scmp.ne.s32.totalorder %s24, %s25
    %p39 = scmp.eq.s32.totalorder %s17, 1
    %p40 = por %p38, %p39
    %p42 = scmp.ne.s32.totalorder %s25, %s41
    %p43 = scmp.eq.s32.totalorder %s17, 0
    %p44 = por %p42, %p43
    %s46 = sadd.s32 %s45, 1
    %p49 = scmp.eq.s32.totalorder %s11, 1
    %p50 = scmp.ne.s32.totalorder %s45, %s47
    %p51 = scmp.eq.s32.totalorder %s11, 0
    %p52 = por %p50, %p51
    %p53 = scmp.ne.s32.totalorder %s45, %s47
    %p54 = scmp.eq.s32.totalorder %s16, 1
    %p55 = por %p53, %p54
    %p56 = scmp.ne.s32.totalorder %s47, %s48
    %p57 = scmp.eq.s32.totalorder %s16, 0
    %p58 = por %p56, %p57
    %p59 = scmp.ne.s32.totalorder %s47, %s48
    %p60 = scmp.eq.s32.totalorder %s17, 1
    %p61 = por %p59, %p60
    %p63 = scmp.ne.s32.totalorder %s48, %s62
    %p64 = scmp.eq.s32.totalorder %s17, 0
    %p65 = por %p63, %p64
    %s67 = sadd.s32 %s66, 1
    %p70 = scmp.eq.s32.totalorder %s11, 1
    %p71 = scmp.ne.s32.totalorder %s66, %s68
    %p72 = scmp.eq.s32.totalorder %s11, 0
    %p73 = por %p71, %p72
    %p74 = scmp.ne.s32.totalorder %s66, %s68
    %p75 = scmp.eq.s32.totalorder %s16, 1
    %p76 = por %p74, %p75
    %p77 = scmp.ne.s32.totalorder %s68, %s69
    %p78 = scmp.eq.s32.totalorder %s16, 0
    %p79 = por %p77, %p78
    %p80 = scmp.ne.s32.totalorder %s68, %s69
    %p81 = scmp.eq.s32.totalorder %s17, 1
    %p82 = por %p80, %p81
    %p84 = scmp.ne.s32.totalorder %s69, %s83
    %p85 = scmp.eq.s32.totalorder %s17, 0
    %p86 = por %p84, %p85
    %s87 = ssub.s32 %s11, %s18
    %p88 = scmp.eq.s32.totalorder %s87, 0
    %s90 = sadd.s32 %s89, 1
    %s91 = scalar_select %p88, %s89, %s90
    %p94 = pneg %p88
    %p95 = scmp.eq.s32.totalorder %s11, 1
    %p96 = por %p94, %p95
    %p97 = scmp.ne.s32.totalorder %s89, %s92
    %p98 = scmp.eq.s32.totalorder %s11, 0
    %p99 = por %p97, %p98
    %p100 = scmp.ne.s32.totalorder %s89, %s92
    %p101 = scmp.eq.s32.totalorder %s16, 1
    %p102 = por %p100, %p101
    %p103 = scmp.ne.s32.totalorder %s92, %s93
    %p104 = scmp.eq.s32.totalorder %s16, 0
    %p105 = por %p103, %p104
    %p106 = scmp.ne.s32.totalorder %s92, %s93
    %p107 = scmp.eq.s32.totalorder %s17, 1
    %p108 = por %p106, %p107
    %p110 = scmp.ne.s32.totalorder %s93, %s109
    %p111 = scmp.eq.s32.totalorder %s17, 0
    %p112 = por %p110, %p111
    %s114 = sadd.s32 %s113, 1
    %p117 = scmp.eq.s32.totalorder %s11, 1
    %p118 = scmp.ne.s32.totalorder %s113, %s115
    %p119 = scmp.eq.s32.totalorder %s11, 0
    %p120 = por %p118, %p119
    %p121 = scmp.ne.s32.totalorder %s113, %s115
    %p122 = scmp.eq.s32.totalorder %s16, 1
    %p123 = por %p121, %p122
    %p124 = scmp.ne.s32.totalorder %s115, %s116
    %p125 = scmp.eq.s32.totalorder %s16, 0
    %p126 = por %p124, %p125
    %p127 = scmp.ne.s32.totalorder %s115, %s116
    %p128 = scmp.eq.s32.totalorder %s17, 1
    %p129 = por %p127, %p128
    %p131 = scmp.ne.s32.totalorder %s116, %s130
    %p132 = scmp.eq.s32.totalorder %s17, 0
    %p133 = por %p131, %p132
    %p134 = scmp.le.s32.totalorder 1, %s11
    %p135 = scmp.lt.s32.totalorder %s11, 3
    %p136 = pnand %p134, %p135
    %p137 = pneg %p136
    // Predicated region
    $region9: #{res_block_forward.4} parent=5 // pred_check
      _
    $region10: #{res_block_forward.4} parent=5 // pred_check_branch
      %139 = sbr.rel (%p136) target = $region12
    $region11: #{res_block_forward.4} parent=5 // pred_region
      %s140 = ssub.s32 %s11, 1
      // Predicated region
      $region13: #{res_block_forward.4} parent=11 // pred_check
        %p141 = pneg %p58
      $region14: #{res_block_forward.4} parent=11 // pred_check_branch
        %143 = sbr.rel (%p141) target = $region16
      $region15: #{res_block_forward.4} parent=11 // pred_region
        _
      $region16: #{res_block_forward.4} parent=11 // pred_fallthru
        _
      // Predicated region
      $region17: #{res_block_forward.4} parent=11 // pred_check
        %p144 = pneg %p79
      $region18: #{res_block_forward.4} parent=11 // pred_check_branch
        %146 = sbr.rel (%p144) target = $region20
      $region19: #{res_block_forward.4} parent=11 // pred_region
        _
      $region20: #{res_block_forward.4} parent=11 // pred_fallthru
        _
    $region12: #{res_block_forward.4} parent=5 // pred_fallthru
      _
    %p147 = scmp.lt.s32.totalorder %s11, 2
    // Predicated region
    $region21: #{res_block_forward.4} parent=5 // pred_check
      %p148 = pneg %p147
    $region22: #{res_block_forward.4} parent=5 // pred_check_branch
      %150 = sbr.rel (%p148) target = $region24
    $region23: #{res_block_forward.4} parent=5 // pred_region
      // Predicated region
      $region25: #{res_block_forward.4} parent=23 // pred_check
        %p151 = pneg %p31
      $region26: #{res_block_forward.4} parent=23 // pred_check_branch
        %153 = sbr.rel (%p151) target = $region28
      $region27: #{res_block_forward.4} parent=23 // pred_region
        %s154 = smul.u32 32, %s11
        %p155 = scmp.lt.s32.totalorder %s154, 63
        %s156 = scalar_select %p155, %s154, 63
        %s157 = smul.addr %s156, 4
        %s158 = scalar_lea.vmem %s0, %s157
        %s159 = smul.u32 32, %s11
      $region28: #{res_block_forward.4} parent=23 // pred_fallthru
        _
    $region24: #{res_block_forward.4} parent=5 // pred_fallthru
      _
    %p160 = scmp.le.s32.totalorder 1, %s11
    %p161 = scmp.lt.s32.totalorder %s11, 3
    %p162 = pnand %p160, %p161
    %p163 = pneg %p162
    // Predicated region
    $region29: #{res_block_forward.4} parent=5 // pred_check
      _
    $region30: #{res_block_forward.4} parent=5 // pred_check_branch
      %165 = sbr.rel (%p162) target = $region32
    $region31: #{res_block_forward.4} parent=5 // pred_region
      %s166 = ssub.s32 %s11, 1
      %s167 = smul.u32 32, %s16
      %p168 = scmp.lt.s32.totalorder %s167, 63
      %s169 = scalar_select %p168, %s167, 63
      %s170 = smul.addr %s169, 4
      %s171 = scalar_lea.vmem %s0, %s170
      %p172 = pneg %p37
      %p173 = pneg %p34
      %p174 = pneg %p58
      %p175 = pneg %p55
      %p176 = pneg %p79
      %p177 = pneg %p76
      %p178 = pneg %p105
      %p179 = pneg %p102
      %s180 = smul.u32 32, %s16
      %p181 = scmp.lt.s32.totalorder %s180, 63
      %s182 = scalar_select %p181, %s180, 63
      %s183 = smul.addr %s182, 8
      %s184 = scalar_lea.vmem %s3, %s183
      %p185 = pneg %p126
      %p186 = pneg %p123
      %s187 = smul.u32 32, %s16
      %p188 = scmp.lt.s32.totalorder %s187, 63
      %s189 = scalar_select %p188, %s187, 63
      %s190 = smul.addr %s189, 4
      %s191 = scalar_lea.vmem %s0, %s190
      %s192 = smul.u32 32, %s16
      %s193 = smul.u32 32, %s16
      %p194 = scmp.lt.s32.totalorder %s193, 63
      %s195 = scalar_select %p194, %s193, 63
      %s196 = smul.addr %s195, 8
      %s197 = scalar_lea.vmem %s3, %s196
      %s198 = smul.u32 32, %s16
      %v200 = vld [vmem:[%s191] sm:$0xf]
      %v201 = vld [vmem:[%s191 + $0x4] sm:$0xf]
      %v202 = vld [vmem:[%s191 + $0x8] sm:$0xf]
      %v203 = vld [vmem:[%s191 + $0xc] sm:$0xf]
      %v204 = vld [vmem:[%s191 + $0x10] sm:$0xf]
      %v205 = vld [vmem:[%s191 + $0x14] sm:$0xf]
      %v206 = vld [vmem:[%s191 + $0x18] sm:$0xf]
      %v207 = vld [vmem:[%s191 + $0x1c] sm:$0xf]
      %v208 = vld [vmem:[%s191 + $0x20] sm:$0xf]
      %v209 = vld [vmem:[%s191 + $0x24] sm:$0xf]
      %v210 = vld [vmem:[%s191 + $0x28] sm:$0xf]
      %v211 = vld [vmem:[%s191 + $0x2c] sm:$0xf]
      %v212 = vld [vmem:[%s191 + $0x30] sm:$0xf]
      %v213 = vld [vmem:[%s191 + $0x34] sm:$0xf]
      %v214 = vld [vmem:[%s191 + $0x38] sm:$0xf]
      %v215 = vld [vmem:[%s191 + $0x3c] sm:$0xf]
      %v216 = vld [vmem:[%s191 + $0x40] sm:$0xf]
      %v217 = vld [vmem:[%s191 + $0x44] sm:$0xf]
      %v218 = vld [vmem:[%s191 + $0x48] sm:$0xf]
      %v219 = vld [vmem:[%s191 + $0x4c] sm:$0xf]
      %v220 = vld [vmem:[%s191 + $0x50] sm:$0xf]
      %v221 = vld [vmem:[%s191 + $0x54] sm:$0xf]
      %v222 = vld [vmem:[%s191 + $0x58] sm:$0xf]
      %v223 = vld [vmem:[%s191 + $0x5c] sm:$0xf]
      %v224 = vld [vmem:[%s191 + $0x60] sm:$0xf]
      %v225 = vld [vmem:[%s191 + $0x64] sm:$0xf]
      %v226 = vld [vmem:[%s191 + $0x68] sm:$0xf]
      %v227 = vld [vmem:[%s191 + $0x6c] sm:$0xf]
      %v228 = vld [vmem:[%s191 + $0x70] sm:$0xf]
      %v229 = vld [vmem:[%s191 + $0x74] sm:$0xf]
      %v230 = vld [vmem:[%s191 + $0x78] sm:$0xf]
      %v231 = vld [vmem:[%s191 + $0x7c] sm:$0xf]
      %v232 = vld [vmem:[%s1] sm:$0xf]
      %v233 = vld [vmem:[%s1 + $0x4] sm:$0xf]
      %v234 = vld [vmem:[%s1 + $0x8] sm:$0xf]
      %v235 = vld [vmem:[%s1 + $0xc] sm:$0xf]
      %v236 = vld [vmem:[%s1 + $0x10] sm:$0x3]
      %v237 = vld [vmem:[%s2] sm:$0x1]
      %v239 = vlaneseq
      %v240 = vshrl.u32 %v239, 7
      %v241 = vsub.s32 0, %v240
      %v242 = vrot.slane %v237, %v241
      %v276 = vunpack.c.l.b16 %v200
      %v277 = vunpack.c.l.b16 %v201
      %v278 = vunpack.c.l.b16 %v202
      %v279 = vunpack.c.l.b16 %v203
      %v280 = vunpack.c.l.b16 %v204
      %v281 = vunpack.c.l.b16 %v205
      %v282 = vunpack.c.l.b16 %v206
      %v283 = vunpack.c.l.b16 %v207
      %v284 = vunpack.c.l.b16 %v208
      %v285 = vunpack.c.l.b16 %v209
      %v286 = vunpack.c.l.b16 %v210
      %v287 = vunpack.c.l.b16 %v211
      %v288 = vunpack.c.l.b16 %v212
      %v289 = vunpack.c.l.b16 %v213
      %v290 = vunpack.c.l.b16 %v214
      %v291 = vunpack.c.l.b16 %v215
      %v292 = vunpack.c.l.b16 %v216
      %v293 = vunpack.c.l.b16 %v217
      %v294 = vunpack.c.l.b16 %v218
      %v295 = vunpack.c.l.b16 %v219
      %v296 = vunpack.c.l.b16 %v220
      %v297 = vunpack.c.l.b16 %v221
      %v298 = vunpack.c.l.b16 %v222
      %v299 = vunpack.c.l.b16 %v223
      %v300 = vunpack.c.l.b16 %v224
      %v301 = vunpack.c.l.b16 %v225
      %v302 = vunpack.c.l.b16 %v226
      %v303 = vunpack.c.l.b16 %v227
      %v304 = vunpack.c.l.b16 %v228
      %v305 = vunpack.c.l.b16 %v229
      %v306 = vunpack.c.l.b16 %v230
      %v307 = vunpack.c.l.b16 %v231
      %v308 = vpack.c.b16 %v277, %v276
      %v309 = vpack.c.b16 %v279, %v278
      %v310 = vpack.c.b16 %v281, %v280
      %v311 = vpack.c.b16 %v283, %v282
      %v312 = vpack.c.b16 %v285, %v284
      %v313 = vpack.c.b16 %v287, %v286
      %v314 = vpack.c.b16 %v289, %v288
      %v315 = vpack.c.b16 %v291, %v290
      %v316 = vpack.c.b16 %v293, %v292
      %v317 = vpack.c.b16 %v295, %v294
      %v318 = vpack.c.b16 %v297, %v296
      %v319 = vpack.c.b16 %v299, %v298
      %v320 = vpack.c.b16 %v301, %v300
      %v321 = vpack.c.b16 %v303, %v302
      %v322 = vpack.c.b16 %v305, %v304
      %v323 = vpack.c.b16 %v307, %v306
      %v329 = vunpack.c.l.b16 %v232
      %v330 = vunpack.c.l.b16 %v233
      %v331 = vunpack.c.l.b16 %v234
      %v332 = vunpack.c.l.b16 %v235
      %v333 = vunpack.c.l.b16 %v236
      %v334 = vpack.c.b16 %v330, %v329
      %v335 = vpack.c.b16 %v332, %v331
      %v336 = vpack.c.b16 %v333, %v333
      %vm339 = vcmask 293888
      %v341 = vsel %vm339, %v308, 0
      %v344 = vsel %vm339, %v309, 0
      %v347 = vsel %vm339, %v310, 0
      %v350 = vsel %vm339, %v311, 0
      %v353 = vsel %vm339, %v312, 0
      %v356 = vsel %vm339, %v313, 0
      %v359 = vsel %vm339, %v314, 0
      %v362 = vsel %vm339, %v315, 0
      %v365 = vsel %vm339, %v316, 0
      %v368 = vsel %vm339, %v317, 0
      %v371 = vsel %vm339, %v318, 0
      %v374 = vsel %vm339, %v319, 0
      %v377 = vsel %vm339, %v320, 0
      %v380 = vsel %vm339, %v321, 0
      %v383 = vsel %vm339, %v322, 0
      %v386 = vsel %vm339, %v323, 0
      %vm388 = vcmask 1041408
      %v390 = vsel %vm388, %v336, 0
      %392 = vmatprep.subr.bf16.mxu0 0
      %393 = vmatpush1.bf16.msra.mxu0 %v334
      %394 = vmatprep.subr.bf16.mxu0 0
      %395 = vmatpush1.bf16.msra.mxu0 %v335
      %396 = vmatprep.subr.bf16.mxu0 0
      %397 = vmatpush1.bf16.msra.mxu0 %v390
      %398 = vmatprep.subr.bf16.mxu0 0
      %399 = vmatpush1.bf16.msra.mxu0 0
      %400 = vmatprep.subr.bf16.mxu0 0
      %401 = vmatpush1.bf16.msra.mxu0 0
      %402 = vmatprep.subr.bf16.mxu0 0
      %403 = vmatpush1.bf16.msra.mxu0 0
      %404 = vmatprep.subr.bf16.mxu0 0
      %405 = vmatpush1.bf16.msra.mxu0 0
      %406 = vmatprep.subr.bf16.mxu0 0
      %407 = vmatpush1.bf16.msra.mxu0 0
      %408 = vmatprep.subr.bf16.mxu0 0
      %409 = vmatpush1.bf16.msra.mxu0 0
      %410 = vmatprep.subr.bf16.mxu0 0
      %411 = vmatpush1.bf16.msra.mxu0 0
      %412 = vmatprep.subr.bf16.mxu0 0
      %413 = vmatpush1.bf16.msra.mxu0 0
      %414 = vmatprep.subr.bf16.mxu0 0
      %415 = vmatpush1.bf16.msra.mxu0 0
      %416 = vmatprep.subr.bf16.mxu0 0
      %417 = vmatpush1.bf16.msra.mxu0 0
      %418 = vmatprep.subr.bf16.mxu0 0
      %419 = vmatpush1.bf16.msra.mxu0 0
      %420 = vmatprep.subr.bf16.mxu0 0
      %421 = vmatpush1.bf16.msra.mxu0 0
      %422 = vmatprep.subr.bf16.mxu0 0
      %423 = vmatpush1.bf16.msra.mxu0 0
      %424 = vmatprep.mubr.bf16.mxu0 0
      %425 = vmatmul.mubr.bf16.gmra.mrb[0].mxu0 %v341
      %v426 = vpop.f32.mrb[0].mxu0
      %v427 = vadd.f32 %v242, %v426
      %v428 = vpop.f32.mrb[0].mxu0
      %v429 = vpop.f32.mrb[0].mxu0
      %v430 = vadd.f32 %v242, %v429
      %v431 = vpop.f32.mrb[0].mxu0
      %432 = vmatprep.mubr.bf16.mxu0 0
      %433 = vmatmul.mubr.bf16.gmra.mrb[0].mxu0 %v344
      %v434 = vpop.f32.mrb[0].mxu0
      %v435 = vadd.f32 %v242, %v434
      %v436 = vpop.f32.mrb[0].mxu0
      %v437 = vpop.f32.mrb[0].mxu0
      %v438 = vadd.f32 %v242, %v437
      %v439 = vpop.f32.mrb[0].mxu0
      %440 = vmatprep.mubr.bf16.mxu0 0
      %441 = vmatmul.mubr.bf16.gmra.mrb[0].mxu0 %v347
      %v442 = vpop.f32.mrb[0].mxu0
      %v443 = vadd.f32 %v242, %v442
      %v444 = vpop.f32.mrb[0].mxu0
      %v445 = vpop.f32.mrb[0].mxu0
      %v446 = vadd.f32 %v242, %v445
      %v447 = vpop.f32.mrb[0].mxu0
      %448 = vmatprep.mubr.bf16.mxu0 0
      %449 = vmatmul.mubr.bf16.gmra.mrb[0].mxu0 %v350
      %v450 = vpop.f32.mrb[0].mxu0
      %v451 = vadd.f32 %v242, %v450
      %v452 = vpop.f32.mrb[0].mxu0
      %v453 = vpop.f32.mrb[0].mxu0
      %v454 = vadd.f32 %v242, %v453
      %v455 = vpop.f32.mrb[0].mxu0
      %456 = vmatprep.mubr.bf16.mxu0 0
      %457 = vmatmul.mubr.bf16.gmra.mrb[0].mxu0 %v353
      %v458 = vpop.f32.mrb[0].mxu0
      %v459 = vadd.f32 %v242, %v458
      %v460 = vpop.f32.mrb[0].mxu0
      %v461 = vpop.f32.mrb[0].mxu0
      %v462 = vadd.f32 %v242, %v461
      %v463 = vpop.f32.mrb[0].mxu0
      %464 = vmatprep.mubr.bf16.mxu0 0
      %465 = vmatmul.mubr.bf16.gmra.mrb[0].mxu0 %v356
      %v466 = vpop.f32.mrb[0].mxu0
      %v467 = vadd.f32 %v242, %v466
      %v468 = vpop.f32.mrb[0].mxu0
      %v469 = vpop.f32.mrb[0].mxu0
      %v470 = vadd.f32 %v242, %v469
      %v471 = vpop.f32.mrb[0].mxu0
      %472 = vmatprep.mubr.bf16.mxu0 0
      %473 = vmatmul.mubr.bf16.gmra.mrb[0].mxu0 %v359
      %v474 = vpop.f32.mrb[0].mxu0
      %v475 = vadd.f32 %v242, %v474
      %v476 = vpop.f32.mrb[0].mxu0
      %v477 = vpop.f32.mrb[0].mxu0
      %v478 = vadd.f32 %v242, %v477
      %v479 = vpop.f32.mrb[0].mxu0
      %480 = vmatprep.mubr.bf16.mxu0 0
      %481 = vmatmul.mubr.bf16.gmra.mrb[0].mxu0 %v362
      %v482 = vpop.f32.mrb[0].mxu0
      %v483 = vadd.f32 %v242, %v482
      %v484 = vpop.f32.mrb[0].mxu0
      %v485 = vpop.f32.mrb[0].mxu0
      %v486 = vadd.f32 %v242, %v485
      %v487 = vpop.f32.mrb[0].mxu0
      %488 = vmatprep.mubr.bf16.mxu0 0
      %489 = vmatmul.mubr.bf16.gmra.mrb[0].mxu0 %v365
      %v490 = vpop.f32.mrb[0].mxu0
      %v491 = vadd.f32 %v242, %v490
      %v492 = vpop.f32.mrb[0].mxu0
      %v493 = vpop.f32.mrb[0].mxu0
      %v494 = vadd.f32 %v242, %v493
      %v495 = vpop.f32.mrb[0].mxu0
      %496 = vmatprep.mubr.bf16.mxu0 0
      %497 = vmatmul.mubr.bf16.gmra.mrb[0].mxu0 %v368
      %v498 = vpop.f32.mrb[0].mxu0
      %v499 = vadd.f32 %v242, %v498
      %v500 = vpop.f32.mrb[0].mxu0
      %v501 = vpop.f32.mrb[0].mxu0
      %v502 = vadd.f32 %v242, %v501
      %v503 = vpop.f32.mrb[0].mxu0
      %504 = vmatprep.mubr.bf16.mxu0 0
      %505 = vmatmul.mubr.bf16.gmra.mrb[0].mxu0 %v371
      %v506 = vpop.f32.mrb[0].mxu0
      %v507 = vadd.f32 %v242, %v506
      %v508 = vpop.f32.mrb[0].mxu0
      %v509 = vpop.f32.mrb[0].mxu0
      %v510 = vadd.f32 %v242, %v509
      %v511 = vpop.f32.mrb[0].mxu0
      %512 = vmatprep.mubr.bf16.mxu0 0
      %513 = vmatmul.mubr.bf16.gmra.mrb[0].mxu0 %v374
      %v514 = vpop.f32.mrb[0].mxu0
      %v515 = vadd.f32 %v242, %v514
      %v516 = vpop.f32.mrb[0].mxu0
      %v517 = vpop.f32.mrb[0].mxu0
      %v518 = vadd.f32 %v242, %v517
      %v519 = vpop.f32.mrb[0].mxu0
      %520 = vmatprep.mubr.bf16.mxu0 0
      %521 = vmatmul.mubr.bf16.gmra.mrb[0].mxu0 %v377
      %v522 = vpop.f32.mrb[0].mxu0
      %v523 = vadd.f32 %v242, %v522
      %v524 = vpop.f32.mrb[0].mxu0
      %v525 = vpop.f32.mrb[0].mxu0
      %v526 = vadd.f32 %v242, %v525
      %v527 = vpop.f32.mrb[0].mxu0
      %528 = vmatprep.mubr.bf16.mxu0 0
      %529 = vmatmul.mubr.bf16.gmra.mrb[0].mxu0 %v380
      %v530 = vpop.f32.mrb[0].mxu0
      %v531 = vadd.f32 %v242, %v530
      %v532 = vpop.f32.mrb[0].mxu0
      %v533 = vpop.f32.mrb[0].mxu0
      %v534 = vadd.f32 %v242, %v533
      %v535 = vpop.f32.mrb[0].mxu0
      %536 = vmatprep.mubr.bf16.mxu0 0
      %537 = vmatmul.mubr.bf16.gmra.mrb[0].mxu0 %v383
      %v538 = vpop.f32.mrb[0].mxu0
      %v539 = vadd.f32 %v242, %v538
      %v540 = vpop.f32.mrb[0].mxu0
      %v541 = vpop.f32.mrb[0].mxu0
      %v542 = vadd.f32 %v242, %v541
      %v543 = vpop.f32.mrb[0].mxu0
      %544 = vmatprep.mubr.bf16.mxu0 0
      %545 = vmatmul.mubr.bf16.gmra.mrb[0].mxu0 %v386
      %v546 = vpop.f32.mrb[0].mxu0
      %v547 = vadd.f32 %v242, %v546
      %v548 = vpop.f32.mrb[0].mxu0
      %v549 = vpop.f32.mrb[0].mxu0
      %v550 = vadd.f32 %v242, %v549
      %v551 = vpop.f32.mrb[0].mxu0
      %552 = vdwg.mxu0
      %553 = vst [vmem:[%s197] sm:$0xff] %v427
      %554 = vst [vmem:[%s197 + $0x8] sm:$0xff] %v430
      %555 = vst [vmem:[%s197 + $0x10] sm:$0xff] %v435
      %556 = vst [vmem:[%s197 + $0x18] sm:$0xff] %v438
      %557 = vst [vmem:[%s197 + $0x20] sm:$0xff] %v443
      %558 = vst [vmem:[%s197 + $0x28] sm:$0xff] %v446
      %559 = vst [vmem:[%s197 + $0x30] sm:$0xff] %v451
      %560 = vst [vmem:[%s197 + $0x38] sm:$0xff] %v454
      %561 = vst [vmem:[%s197 + $0x40] sm:$0xff] %v459
      %562 = vst [vmem:[%s197 + $0x48] sm:$0xff] %v462
      %563 = vst [vmem:[%s197 + $0x50] sm:$0xff] %v467
      %564 = vst [vmem:[%s197 + $0x58] sm:$0xff] %v470
      %565 = vst [vmem:[%s197 + $0x60] sm:$0xff] %v475
      %566 = vst [vmem:[%s197 + $0x68] sm:$0xff] %v478
      %567 = vst [vmem:[%s197 + $0x70] sm:$0xff] %v483
      %568 = vst [vmem:[%s197 + $0x78] sm:$0xff] %v486
      %569 = vst [vmem:[%s197 + $0x80] sm:$0xff] %v491
      %570 = vst [vmem:[%s197 + $0x88] sm:$0xff] %v494
      %571 = vst [vmem:[%s197 + $0x90] sm:$0xff] %v499
      %572 = vst [vmem:[%s197 + $0x98] sm:$0xff] %v502
      %573 = vst [vmem:[%s197 + $0xa0] sm:$0xff] %v507
      %574 = vst [vmem:[%s197 + $0xa8] sm:$0xff] %v510
      %575 = vst [vmem:[%s197 + $0xb0] sm:$0xff] %v515
      %576 = vst [vmem:[%s197 + $0xb8] sm:$0xff] %v518
      %577 = vst [vmem:[%s197 + $0xc0] sm:$0xff] %v523
      %578 = vst [vmem:[%s197 + $0xc8] sm:$0xff] %v526
      %579 = vst [vmem:[%s197 + $0xd0] sm:$0xff] %v531
      %580 = vst [vmem:[%s197 + $0xd8] sm:$0xff] %v534
      %581 = vst [vmem:[%s197 + $0xe0] sm:$0xff] %v539
      %582 = vst [vmem:[%s197 + $0xe8] sm:$0xff] %v542
      %583 = vst [vmem:[%s197 + $0xf0] sm:$0xff] %v547
      %584 = vst [vmem:[%s197 + $0xf8] sm:$0xff] %v550
      %s585 = smul.u32 %s16, 256
      %v586 = vlaneseq
      %v587 = vshrl.u32 %v586, 7
      %v588 = vadd.s32 %v587, 8
      %v589 = vadd.s32 %v587, 16
      %v590 = vadd.s32 %v587, 24
      %v591 = vadd.s32 %v587, 32
      %v592 = vadd.s32 %v587, 40
      %v593 = vadd.s32 %v587, 48
      %v594 = vadd.s32 %v587, 56
      %v595 = vadd.s32 %v587, 64
      %v596 = vadd.s32 %v587, 72
      %v597 = vadd.s32 %v587, 80
      %v598 = vadd.s32 %v587, 88
      %v599 = vadd.s32 %v587, 96
      %v600 = vadd.s32 %v587, 104
      %v601 = vadd.s32 %v587, 112
      %v602 = vadd.s32 %v587, 120
      %v603 = vadd.s32 %v587, 128
      %v604 = vadd.s32 %v587, 136
      %v605 = vadd.s32 %v587, 144
      %v606 = vadd.s32 %v587, 152
      %v607 = vadd.s32 %v587, 160
      %v608 = vadd.s32 %v587, 168
      %v609 = vadd.s32 %v587, 176
      %v610 = vadd.s32 %v587, 184
      %v611 = vadd.s32 %v587, 192
      %v612 = vadd.s32 %v587, 200
      %v613 = vadd.s32 %v587, 208
      %v614 = vadd.s32 %v587, 216
      %v615 = vadd.s32 %v587, 224
      %v616 = vadd.s32 %v587, 232
      %v617 = vadd.s32 %v587, 240
      %v618 = vadd.s32 %v587, 248
      %v619 = vstv %s585
      %v620 = vadd.s32 %v619, %v587
      %v621 = vadd.s32 %v619, %v588
      %v622 = vadd.s32 %v619, %v589
      %v623 = vadd.s32 %v619, %v590
      %v624 = vadd.s32 %v619, %v591
      %v625 = vadd.s32 %v619, %v592
      %v626 = vadd.s32 %v619, %v593
      %v627 = vadd.s32 %v619, %v594
      %v628 = vadd.s32 %v619, %v595
      %v629 = vadd.s32 %v619, %v596
      %v630 = vadd.s32 %v619, %v597
      %v631 = vadd.s32 %v619, %v598
      %v632 = vadd.s32 %v619, %v599
      %v633 = vadd.s32 %v619, %v600
      %v634 = vadd.s32 %v619, %v601
      %v635 = vadd.s32 %v619, %v602
      %v636 = vadd.s32 %v619, %v603
      %v637 = vadd.s32 %v619, %v604
      %v638 = vadd.s32 %v619, %v605
      %v639 = vadd.s32 %v619, %v606
      %v640 = vadd.s32 %v619, %v607
      %v641 = vadd.s32 %v619, %v608
      %v642 = vadd.s32 %v619, %v609
      %v643 = vadd.s32 %v619, %v610
      %v644 = vadd.s32 %v619, %v611
      %v645 = vadd.s32 %v619, %v612
      %v646 = vadd.s32 %v619, %v613
      %v647 = vadd.s32 %v619, %v614
      %v648 = vadd.s32 %v619, %v615
      %v649 = vadd.s32 %v619, %v616
      %v650 = vadd.s32 %v619, %v617
      %v651 = vadd.s32 %v619, %v618
      %vm652 = vcmp.lt.s32.totalorder %v620, 512
      %vm653 = vcmp.lt.s32.totalorder %v621, 512
      %vm654 = vcmp.lt.s32.totalorder %v622, 512
      %vm655 = vcmp.lt.s32.totalorder %v623, 512
      %vm656 = vcmp.lt.s32.totalorder %v624, 512
      %vm657 = vcmp.lt.s32.totalorder %v625, 512
      %vm658 = vcmp.lt.s32.totalorder %v626, 512
      %vm659 = vcmp.lt.s32.totalorder %v627, 512
      %vm660 = vcmp.lt.s32.totalorder %v628, 512
      %vm661 = vcmp.lt.s32.totalorder %v629, 512
      %vm662 = vcmp.lt.s32.totalorder %v630, 512
      %vm663 = vcmp.lt.s32.totalorder %v631, 512
      %vm664 = vcmp.lt.s32.totalorder %v632, 512
      %vm665 = vcmp.lt.s32.totalorder %v633, 512
      %vm666 = vcmp.lt.s32.totalorder %v634, 512
      %vm667 = vcmp.lt.s32.totalorder %v635, 512
      %vm668 = vcmp.lt.s32.totalorder %v636, 512
      %vm669 = vcmp.lt.s32.totalorder %v637, 512
      %vm670 = vcmp.lt.s32.totalorder %v638, 512
      %vm671 = vcmp.lt.s32.totalorder %v639, 512
      %vm672 = vcmp.lt.s32.totalorder %v640, 512
      %vm673 = vcmp.lt.s32.totalorder %v641, 512
      %vm674 = vcmp.lt.s32.totalorder %v642, 512
      %vm675 = vcmp.lt.s32.totalorder %v643, 512
      %vm676 = vcmp.lt.s32.totalorder %v644, 512
      %vm677 = vcmp.lt.s32.totalorder %v645, 512
      %vm678 = vcmp.lt.s32.totalorder %v646, 512
      %vm679 = vcmp.lt.s32.totalorder %v647, 512
      %vm680 = vcmp.lt.s32.totalorder %v648, 512
      %vm681 = vcmp.lt.s32.totalorder %v649, 512
      %vm682 = vcmp.lt.s32.totalorder %v650, 512
      %vm683 = vcmp.lt.s32.totalorder %v651, 512
      %v684 = vsel %vm652, %v427, 0.0
      %v685 = vsel %vm653, %v430, 0.0
      %v686 = vsel %vm654, %v435, 0.0
      %v687 = vsel %vm655, %v438, 0.0
      %v688 = vsel %vm656, %v443, 0.0
      %v689 = vsel %vm657, %v446, 0.0
      %v690 = vsel %vm658, %v451, 0.0
      %v691 = vsel %vm659, %v454, 0.0
      %v692 = vsel %vm660, %v459, 0.0
      %v693 = vsel %vm661, %v462, 0.0
      %v694 = vsel %vm662, %v467, 0.0
      %v695 = vsel %vm663, %v470, 0.0
      %v696 = vsel %vm664, %v475, 0.0
      %v697 = vsel %vm665, %v478, 0.0
      %v698 = vsel %vm666, %v483, 0.0
      %v699 = vsel %vm667, %v486, 0.0
      %v700 = vsel %vm668, %v491, 0.0
      %v701 = vsel %vm669, %v494, 0.0
      %v702 = vsel %vm670, %v499, 0.0
      %v703 = vsel %vm671, %v502, 0.0
      %v704 = vsel %vm672, %v507, 0.0
      %v705 = vsel %vm673, %v510, 0.0
      %v706 = vsel %vm674, %v515, 0.0
      %v707 = vsel %vm675, %v518, 0.0
      %v708 = vsel %vm676, %v523, 0.0
      %v709 = vsel %vm677, %v526, 0.0
      %v710 = vsel %vm678, %v531, 0.0
      %v711 = vsel %vm679, %v534, 0.0
      %v712 = vsel %vm680, %v539, 0.0
      %v713 = vsel %vm681, %v542, 0.0
      %v714 = vsel %vm682, %v547, 0.0
      %v715 = vsel %vm683, %v550, 0.0
      %v716 = vadd.f32 %v684, %v685
      %v717 = vadd.f32 %v716, %v686
      %v718 = vadd.f32 %v717, %v687
      %v719 = vadd.f32 %v718, %v688
      %v720 = vadd.f32 %v719, %v689
      %v721 = vadd.f32 %v720, %v690
      %v722 = vadd.f32 %v721, %v691
      %v723 = vadd.f32 %v722, %v692
      %v724 = vadd.f32 %v723, %v693
      %v725 = vadd.f32 %v724, %v694
      %v726 = vadd.f32 %v725, %v695
      %v727 = vadd.f32 %v726, %v696
      %v728 = vadd.f32 %v727, %v697
      %v729 = vadd.f32 %v728, %v698
      %v730 = vadd.f32 %v729, %v699
      %v731 = vadd.f32 %v730, %v700
      %v732 = vadd.f32 %v731, %v701
      %v733 = vadd.f32 %v732, %v702
      %v734 = vadd.f32 %v733, %v703
      %v735 = vadd.f32 %v734, %v704
      %v736 = vadd.f32 %v735, %v705
      %v737 = vadd.f32 %v736, %v706
      %v738 = vadd.f32 %v737, %v707
      %v739 = vadd.f32 %v738, %v708
      %v740 = vadd.f32 %v739, %v709
      %v741 = vadd.f32 %v740, %v710
      %v742 = vadd.f32 %v741, %v711
      %v743 = vadd.f32 %v742, %v712
      %v744 = vadd.f32 %v743, %v713
      %v745 = vadd.f32 %v744, %v714
      %v746 = vadd.f32 %v745, %v715
      %v747 = vrot.slane %v746, 4
      %v748 = vadd.f32 %v746, %v747
      %v749 = vrot.slane %v748, 2
      %v750 = vadd.f32 %v748, %v749
      %v751 = vrot.slane %v750, 1
      %v752 = vadd.f32 %v750, %v751
      %v753 = vmul.f32 %v684, %v684
      %v754 = vmul.f32 %v685, %v685
      %v755 = vmul.f32 %v686, %v686
      %v756 = vmul.f32 %v687, %v687
      %v757 = vmul.f32 %v688, %v688
      %v758 = vmul.f32 %v689, %v689
      %v759 = vmul.f32 %v690, %v690
      %v760 = vmul.f32 %v691, %v691
      %v761 = vmul.f32 %v692, %v692
      %v762 = vmul.f32 %v693, %v693
      %v763 = vmul.f32 %v694, %v694
      %v764 = vmul.f32 %v695, %v695
      %v765 = vmul.f32 %v696, %v696
      %v766 = vmul.f32 %v697, %v697
      %v767 = vmul.f32 %v698, %v698
      %v768 = vmul.f32 %v699, %v699
      %v769 = vmul.f32 %v700, %v700
      %v770 = vmul.f32 %v701, %v701
      %v771 = vmul.f32 %v702, %v702
      %v772 = vmul.f32 %v703, %v703
      %v773 = vmul.f32 %v704, %v704
      %v774 = vmul.f32 %v705, %v705
      %v775 = vmul.f32 %v706, %v706
      %v776 = vmul.f32 %v707, %v707
      %v777 = vmul.f32 %v708, %v708
      %v778 = vmul.f32 %v709, %v709
      %v779 = vmul.f32 %v710, %v710
      %v780 = vmul.f32 %v711, %v711
      %v781 = vmul.f32 %v712, %v712
      %v782 = vmul.f32 %v713, %v713
      %v783 = vmul.f32 %v714, %v714
      %v784 = vmul.f32 %v715, %v715
      %v785 = vadd.f32 %v753, %v754
      %v786 = vadd.f32 %v785, %v755
      %v787 = vadd.f32 %v786, %v756
      %v788 = vadd.f32 %v787, %v757
      %v789 = vadd.f32 %v788, %v758
      %v790 = vadd.f32 %v789, %v759
      %v791 = vadd.f32 %v790, %v760
      %v792 = vadd.f32 %v791, %v761
      %v793 = vadd.f32 %v792, %v762
      %v794 = vadd.f32 %v793, %v763
      %v795 = vadd.f32 %v794, %v764
      %v796 = vadd.f32 %v795, %v765
      %v797 = vadd.f32 %v796, %v766
      %v798 = vadd.f32 %v797, %v767
      %v799 = vadd.f32 %v798, %v768
      %v800 = vadd.f32 %v799, %v769
      %v801 = vadd.f32 %v800, %v770
      %v802 = vadd.f32 %v801, %v771
      %v803 = vadd.f32 %v802, %v772
      %v804 = vadd.f32 %v803, %v773
      %v805 = vadd.f32 %v804, %v774
      %v806 = vadd.f32 %v805, %v775
      %v807 = vadd.f32 %v806, %v776
      %v808 = vadd.f32 %v807, %v777
      %v809 = vadd.f32 %v808, %v778
      %v810 = vadd.f32 %v809, %v779
      %v811 = vadd.f32 %v810, %v780
      %v812 = vadd.f32 %v811, %v781
      %v813 = vadd.f32 %v812, %v782
      %v814 = vadd.f32 %v813, %v783
      %v815 = vadd.f32 %v814, %v784
      %v816 = vrot.slane %v815, 4
      %v817 = vadd.f32 %v815, %v816
      %v818 = vrot.slane %v817, 2
      %v819 = vadd.f32 %v817, %v818
      %v820 = vrot.slane %v819, 1
      %v821 = vadd.f32 %v819, %v820
      %vm822 = vcmask 1040384
      %v823 = vsel %vm822, %v752, %v821
      %p824 = scmp.eq.s32.totalorder %s16, 0
      // Predicated region
      $region33: #{res_block_forward.4} parent=31 // pred_check
        %p825 = pneg %p824
      $region34: #{res_block_forward.4} parent=31 // pred_check_branch
        %827 = sbr.rel (%p825) target = $region36
      $region35: #{res_block_forward.4} parent=31 // pred_region
        %828 = vst [vmem:[%s4] sm:$0x3] 0.0
      $region36: #{res_block_forward.4} parent=31 // pred_fallthru
        _
      %v829 = vld [vmem:[%s4] sm:$0x3]
      %v830 = vadd.f32 %v829, %v823
      %831 = vst [vmem:[%s4] sm:$0x3] %v830
      %s832 = smul.u32 32, %s16
      %p833 = scmp.lt.s32.totalorder %s832, 63
      %s834 = scalar_select %p833, %s832, 63
      %s835 = smul.addr %s834, 8
      %s836 = scalar_lea.vmem %s3, %s835
      // Predicated region
      $region37: #{res_block_forward.4} parent=31 // pred_check
        %p837 = pneg %p102
      $region38: #{res_block_forward.4} parent=31 // pred_check_branch
        %839 = sbr.rel (%p837) target = $region40
      $region39: #{res_block_forward.4} parent=31 // pred_region
        %s840 = smul.u32 32, %s16
      $region40: #{res_block_forward.4} parent=31 // pred_fallthru
        _
      // Predicated region
      $region41: #{res_block_forward.4} parent=31 // pred_check
        %p841 = pneg %p123
      $region42: #{res_block_forward.4} parent=31 // pred_check_branch
        %843 = sbr.rel (%p841) target = $region44
      $region43: #{res_block_forward.4} parent=31 // pred_region
        _
      $region44: #{res_block_forward.4} parent=31 // pred_fallthru
        _
      // Predicated region
      $region45: #{res_block_forward.4} parent=31 // pred_check
        %p844 = pneg %p123
      $region46: #{res_block_forward.4} parent=31 // pred_check_branch
        %846 = sbr.rel (%p844) target = $region48
      $region47: #{res_block_forward.4} parent=31 // pred_region
        _
      $region48: #{res_block_forward.4} parent=31 // pred_fallthru
        _
    $region32: #{res_block_forward.4} parent=5 // pred_fallthru
      _
    %p847 = scmp.le.s32.totalorder 2, %s11
    // Predicated region
    $region49: #{res_block_forward.4} parent=5 // pred_check
      %p848 = pneg %p847
    $region50: #{res_block_forward.4} parent=5 // pred_check_branch
      %850 = sbr.rel (%p848) target = $region52
    $region51: #{res_block_forward.4} parent=5 // pred_region
      %s851 = ssub.s32 %s11, 2
      // Predicated region
      $region53: #{res_block_forward.4} parent=51 // pred_check
        %p852 = pneg %p108
      $region54: #{res_block_forward.4} parent=51 // pred_check_branch
        %854 = sbr.rel (%p852) target = $region56
      $region55: #{res_block_forward.4} parent=51 // pred_region
        %s855 = smul.u32 32, %s17
        %p856 = scmp.lt.s32.totalorder %s855, 63
        %s857 = scalar_select %p856, %s855, 63
        %s858 = smul.addr %s857, 8
        %s859 = scalar_lea.vmem %s3, %s858
      $region56: #{res_block_forward.4} parent=51 // pred_fallthru
        _
    $region52: #{res_block_forward.4} parent=5 // pred_fallthru
      _
  $region6: #{res_block_forward.4} parent=0 // loop_footer
    %s15 = sadd.s32 1, %s11
  $region7: #{res_block_forward.4} parent=0 // loop_footer_branch
    %10 = sbr.rel target = $region3
  $region8: #{res_block_forward.4} parent=0 // loop_exit
    _

// kernel: res_block_forward.7
$region0: #{res_block_forward.7}
  #allocation0 [shape = 'u32[]', space=smem, size = 0x4, offset = 0x4, fixed_abs, tag = 'smem constant byte address 0x4 - core index']
  #allocation1 [shape = 'u32[144,128]{1,0:T(1,128)}', space=vmem, size = 0x12000, scoped, tag = 'internal scratch']
  %s0 = inlined_call_operand.vmem [shape: f32[512,128], index: 0, kind: input, shape index: {}]
  %s1 = inlined_call_operand.vmem [shape: f32[2,128], index: 1, kind: input, shape index: {}]
  %s2 = inlined_call_operand.vmem [shape: f32[1,128], index: 2, kind: input, shape index: {}]
  %s3 = inlined_call_operand.vmem [shape: f32[1,128], index: 3, kind: input, shape index: {}]
  %s4 = inlined_call_operand.vmem [shape: f32[512,128], index: 4, kind: input, shape index: {}]
  %s5 = inlined_call_operand.vmem [shape: f32[512,128], index: 5, kind: output, shape index: {}]
  %s6 = sld [smem:[#allocation0]]
  $region53: #{res_block_forward.7} parent=0
    _
  %s8 = ssub.s32 1, %s6
  %s9 = scalar_select 0, %s8, %s6
  loop: start=0, step=1, limit=4
  $region2: #{res_block_forward.7} parent=0 // loop_pre_header
    _
  $region3: #{res_block_forward.7} parent=0 // loop_header
    %s11 = sphi 0, %s15
    %p12 = scmp.ge.s32.totalorder %s11, 4
    %s21 = sphi 0, %s23
    %s24 = sphi 0, %s21
    %s25 = sphi 0, %s24
    %s41 = sphi 0, %s25
    %s45 = sphi 0, %s45
    %s47 = sphi 0, %s45
    %s48 = sphi 0, %s47
    %s62 = sphi 0, %s48
    %s66 = sphi 0, %s66
    %s68 = sphi 0, %s66
    %s69 = sphi 0, %s68
    %s83 = sphi 0, %s69
    %s87 = sphi 0, %s87
    %s89 = sphi 0, %s87
    %s90 = sphi 0, %s89
    %s104 = sphi 0, %s90
    %s110 = sphi 0, %s112
    %s113 = sphi 0, %s110
    %s114 = sphi 0, %s113
    %s130 = sphi 0, %s114
    %s136 = sphi 0, %s138
    %s139 = sphi 0, %s136
    %s140 = sphi 0, %s139
    %s156 = sphi 0, %s140
  $region4: #{res_block_forward.7} parent=0 // loop_header_branch
    %14 = sbr.rel (%p12) target = $region8
  $region5: #{res_block_forward.7} parent=0 // loop_body
    %s16 = ssub.s32 %s11, 1
    %s17 = ssub.s32 %s11, 2
    %s18 = sadd.s32 %s11, 1
    %s19 = ssub.s32 %s11, %s18
    %p20 = scmp.eq.s32.totalorder %s19, 0
    %s22 = sadd.s32 %s21, 1
    %s23 = scalar_select %p20, %s21, %s22
    %p26 = pneg %p20
    %p27 = scmp.eq.s32.totalorder %s11, 1
    %p28 = por %p26, %p27
    %p29 = scmp.ne.s32.totalorder %s21, %s24
    %p30 = scmp.eq.s32.totalorder %s11, 0
    %p31 = por %p29, %p30
    %p32 = scmp.ne.s32.totalorder %s21, %s24
    %p33 = scmp.eq.s32.totalorder %s16, 1
    %p34 = por %p32, %p33
    %p35 = scmp.ne.s32.totalorder %s24, %s25
    %p36 = scmp.eq.s32.totalorder %s16, 0
    %p37 = por %p35, %p36
    %p38 = scmp.ne.s32.totalorder %s24, %s25
    %p39 = scmp.eq.s32.totalorder %s17, 1
    %p40 = por %p38, %p39
    %p42 = scmp.ne.s32.totalorder %s25, %s41
    %p43 = scmp.eq.s32.totalorder %s17, 0
    %p44 = por %p42, %p43
    %s46 = sadd.s32 %s45, 1
    %p49 = scmp.eq.s32.totalorder %s11, 1
    %p50 = scmp.ne.s32.totalorder %s45, %s47
    %p51 = scmp.eq.s32.totalorder %s11, 0
    %p52 = por %p50, %p51
    %p53 = scmp.ne.s32.totalorder %s45, %s47
    %p54 = scmp.eq.s32.totalorder %s16, 1
    %p55 = por %p53, %p54
    %p56 = scmp.ne.s32.totalorder %s47, %s48
    %p57 = scmp.eq.s32.totalorder %s16, 0
    %p58 = por %p56, %p57
    %p59 = scmp.ne.s32.totalorder %s47, %s48
    %p60 = scmp.eq.s32.totalorder %s17, 1
    %p61 = por %p59, %p60
    %p63 = scmp.ne.s32.totalorder %s48, %s62
    %p64 = scmp.eq.s32.totalorder %s17, 0
    %p65 = por %p63, %p64
    %s67 = sadd.s32 %s66, 1
    %p70 = scmp.eq.s32.totalorder %s11, 1
    %p71 = scmp.ne.s32.totalorder %s66, %s68
    %p72 = scmp.eq.s32.totalorder %s11, 0
    %p73 = por %p71, %p72
    %p74 = scmp.ne.s32.totalorder %s66, %s68
    %p75 = scmp.eq.s32.totalorder %s16, 1
    %p76 = por %p74, %p75
    %p77 = scmp.ne.s32.totalorder %s68, %s69
    %p78 = scmp.eq.s32.totalorder %s16, 0
    %p79 = por %p77, %p78
    %p80 = scmp.ne.s32.totalorder %s68, %s69
    %p81 = scmp.eq.s32.totalorder %s17, 1
    %p82 = por %p80, %p81
    %p84 = scmp.ne.s32.totalorder %s69, %s83
    %p85 = scmp.eq.s32.totalorder %s17, 0
    %p86 = por %p84, %p85
    %s88 = sadd.s32 %s87, 1
    %p91 = scmp.eq.s32.totalorder %s11, 1
    %p92 = scmp.ne.s32.totalorder %s87, %s89
    %p93 = scmp.eq.s32.totalorder %s11, 0
    %p94 = por %p92, %p93
    %p95 = scmp.ne.s32.totalorder %s87, %s89
    %p96 = scmp.eq.s32.totalorder %s16, 1
    %p97 = por %p95, %p96
    %p98 = scmp.ne.s32.totalorder %s89, %s90
    %p99 = scmp.eq.s32.totalorder %s16, 0
    %p100 = por %p98, %p99
    %p101 = scmp.ne.s32.totalorder %s89, %s90
    %p102 = scmp.eq.s32.totalorder %s17, 1
    %p103 = por %p101, %p102
    %p105 = scmp.ne.s32.totalorder %s90, %s104
    %p106 = scmp.eq.s32.totalorder %s17, 0
    %p107 = por %p105, %p106
    %s108 = ssub.s32 %s11, %s18
    %p109 = scmp.eq.s32.totalorder %s108, 0
    %s111 = sadd.s32 %s110, 1
    %s112 = scalar_select %p109, %s110, %s111
    %p115 = pneg %p109
    %p116 = scmp.eq.s32.totalorder %s11, 1
    %p117 = por %p115, %p116
    %p118 = scmp.ne.s32.totalorder %s110, %s113
    %p119 = scmp.eq.s32.totalorder %s11, 0
    %p120 = por %p118, %p119
    %p121 = scmp.ne.s32.totalorder %s110, %s113
    %p122 = scmp.eq.s32.totalorder %s16, 1
    %p123 = por %p121, %p122
    %p124 = scmp.ne.s32.totalorder %s113, %s114
    %p125 = scmp.eq.s32.totalorder %s16, 0
    %p126 = por %p124, %p125
    %p127 = scmp.ne.s32.totalorder %s113, %s114
    %p128 = scmp.eq.s32.totalorder %s17, 1
    %p129 = por %p127, %p128
    %p131 = scmp.ne.s32.totalorder %s114, %s130
    %p132 = scmp.eq.s32.totalorder %s17, 0
    %p133 = por %p131, %p132
    %s134 = ssub.s32 %s11, %s18
    %p135 = scmp.eq.s32.totalorder %s134, 0
    %s137 = sadd.s32 %s136, 1
    %s138 = scalar_select %p135, %s136, %s137
    %p141 = pneg %p135
    %p142 = scmp.eq.s32.totalorder %s11, 1
    %p143 = por %p141, %p142
    %p144 = scmp.ne.s32.totalorder %s136, %s139
    %p145 = scmp.eq.s32.totalorder %s11, 0
    %p146 = por %p144, %p145
    %p147 = scmp.ne.s32.totalorder %s136, %s139
    %p148 = scmp.eq.s32.totalorder %s16, 1
    %p149 = por %p147, %p148
    %p150 = scmp.ne.s32.totalorder %s139, %s140
    %p151 = scmp.eq.s32.totalorder %s16, 0
    %p152 = por %p150, %p151
    %p153 = scmp.ne.s32.totalorder %s139, %s140
    %p154 = scmp.eq.s32.totalorder %s17, 1
    %p155 = por %p153, %p154
    %p157 = scmp.ne.s32.totalorder %s140, %s156
    %p158 = scmp.eq.s32.totalorder %s17, 0
    %p159 = por %p157, %p158
    %p160 = scmp.le.s32.totalorder 1, %s11
    %p161 = scmp.lt.s32.totalorder %s11, 3
    %p162 = pnand %p160, %p161
    %p163 = pneg %p162
    // Predicated region
    $region9: #{res_block_forward.7} parent=5 // pred_check
      _
    $region10: #{res_block_forward.7} parent=5 // pred_check_branch
      %165 = sbr.rel (%p162) target = $region12
    $region11: #{res_block_forward.7} parent=5 // pred_region
      %s166 = ssub.s32 %s11, 1
      // Predicated region
      $region13: #{res_block_forward.7} parent=11 // pred_check
        %p167 = pneg %p58
      $region14: #{res_block_forward.7} parent=11 // pred_check_branch
        %169 = sbr.rel (%p167) target = $region16
      $region15: #{res_block_forward.7} parent=11 // pred_region
        _
      $region16: #{res_block_forward.7} parent=11 // pred_fallthru
        _
      // Predicated region
      $region17: #{res_block_forward.7} parent=11 // pred_check
        %p170 = pneg %p79
      $region18: #{res_block_forward.7} parent=11 // pred_check_branch
        %172 = sbr.rel (%p170) target = $region20
      $region19: #{res_block_forward.7} parent=11 // pred_region
        _
      $region20: #{res_block_forward.7} parent=11 // pred_fallthru
        _
      // Predicated region
      $region21: #{res_block_forward.7} parent=11 // pred_check
        %p173 = pneg %p100
      $region22: #{res_block_forward.7} parent=11 // pred_check_branch
        %175 = sbr.rel (%p173) target = $region24
      $region23: #{res_block_forward.7} parent=11 // pred_region
        _
      $region24: #{res_block_forward.7} parent=11 // pred_fallthru
        _
    $region12: #{res_block_forward.7} parent=5 // pred_fallthru
      _
    %p176 = scmp.lt.s32.totalorder %s11, 2
    // Predicated region
    $region25: #{res_block_forward.7} parent=5 // pred_check
      %p177 = pneg %p176
    $region26: #{res_block_forward.7} parent=5 // pred_check_branch
      %179 = sbr.rel (%p177) target = $region28
    $region27: #{res_block_forward.7} parent=5 // pred_region
      // Predicated region
      $region29: #{res_block_forward.7} parent=27 // pred_check
        %p180 = pneg %p31
      $region30: #{res_block_forward.7} parent=27 // pred_check_branch
        %182 = sbr.rel (%p180) target = $region32
      $region31: #{res_block_forward.7} parent=27 // pred_region
        %s183 = smul.u32 32, %s11
        %p184 = scmp.lt.s32.totalorder %s183, 63
        %s185 = scalar_select %p184, %s183, 63
        %s186 = smul.addr %s185, 8
        %s187 = scalar_lea.vmem %s0, %s186
        %s188 = smul.u32 32, %s11
      $region32: #{res_block_forward.7} parent=27 // pred_fallthru
        _
      // Predicated region
      $region33: #{res_block_forward.7} parent=27 // pred_check
        %p189 = pneg %p120
      $region34: #{res_block_forward.7} parent=27 // pred_check_branch
        %191 = sbr.rel (%p189) target = $region36
      $region35: #{res_block_forward.7} parent=27 // pred_region
        %s192 = smul.u32 32, %s11
        %p193 = scmp.lt.s32.totalorder %s192, 63
        %s194 = scalar_select %p193, %s192, 63
        %s195 = smul.addr %s194, 8
        %s196 = scalar_lea.vmem %s4, %s195
        %s197 = smul.u32 32, %s11
      $region36: #{res_block_forward.7} parent=27 // pred_fallthru
        _
    $region28: #{res_block_forward.7} parent=5 // pred_fallthru
      _
    %p198 = scmp.le.s32.totalorder 1, %s11
    %p199 = scmp.lt.s32.totalorder %s11, 3
    %p200 = pnand %p198, %p199
    %p201 = pneg %p200
    // Predicated region
    $region37: #{res_block_forward.7} parent=5 // pred_check
      _
    $region38: #{res_block_forward.7} parent=5 // pred_check_branch
      %203 = sbr.rel (%p200) target = $region40
    $region39: #{res_block_forward.7} parent=5 // pred_region
      %s204 = ssub.s32 %s11, 1
      %s205 = smul.u32 32, %s16
      %p206 = scmp.lt.s32.totalorder %s205, 63
      %s207 = scalar_select %p206, %s205, 63
      %s208 = smul.addr %s207, 8
      %s209 = scalar_lea.vmem %s0, %s208
      %p210 = pneg %p37
      %p211 = pneg %p34
      %p212 = pneg %p58
      %p213 = pneg %p55
      %p214 = pneg %p79
      %p215 = pneg %p76
      %p216 = pneg %p100
      %p217 = pneg %p97
      %s218 = smul.u32 32, %s16
      %p219 = scmp.lt.s32.totalorder %s218, 63
      %s220 = scalar_select %p219, %s218, 63
      %s221 = smul.addr %s220, 8
      %s222 = scalar_lea.vmem %s4, %s221
      %p223 = pneg %p126
      %p224 = pneg %p123
      %p225 = pneg %p152
      %p226 = pneg %p149
      %s227 = smul.u32 32, %s16
      %p228 = scmp.lt.s32.totalorder %s227, 63
      %s229 = scalar_select %p228, %s227, 63
      %s230 = smul.addr %s229, 8
      %s231 = scalar_lea.vmem %s5, %s230
      %s232 = smul.u32 32, %s16
      %p233 = scmp.lt.s32.totalorder %s232, 63
      %s234 = scalar_select %p233, %s232, 63
      %s235 = smul.addr %s234, 8
      %s236 = scalar_lea.vmem %s0, %s235
      %s237 = smul.u32 32, %s16
      %s238 = smul.u32 32, %s16
      %p239 = scmp.lt.s32.totalorder %s238, 63
      %s240 = scalar_select %p239, %s238, 63
      %s241 = smul.addr %s240, 8
      %s242 = scalar_lea.vmem %s4, %s241
      %s243 = smul.u32 32, %s16
      %s244 = smul.u32 32, %s16
      %p245 = scmp.lt.s32.totalorder %s244, 63
      %s246 = scalar_select %p245, %s244, 63
      %s247 = smul.addr %s246, 8
      %s248 = scalar_lea.vmem %s5, %s247
      %s249 = smul.u32 32, %s16
      %v250 = vld [vmem:[%s236] sm:$0xff]
      %v251 = vld [vmem:[%s236 + $0x8] sm:$0xff]
      %v252 = vld [vmem:[%s236 + $0x10] sm:$0xff]
      %v253 = vld [vmem:[%s236 + $0x18] sm:$0xff]
      %v254 = vld [vmem:[%s236 + $0x20] sm:$0xff]
      %v255 = vld [vmem:[%s236 + $0x28] sm:$0xff]
      %v256 = vld [vmem:[%s236 + $0x30] sm:$0xff]
      %v257 = vld [vmem:[%s236 + $0x38] sm:$0xff]
      %v258 = vld [vmem:[%s236 + $0x40] sm:$0xff]
      %v259 = vld [vmem:[%s236 + $0x48] sm:$0xff]
      %v260 = vld [vmem:[%s236 + $0x50] sm:$0xff]
      %v261 = vld [vmem:[%s236 + $0x58] sm:$0xff]
      %v262 = vld [vmem:[%s236 + $0x60] sm:$0xff]
      %v263 = vld [vmem:[%s236 + $0x68] sm:$0xff]
      %v264 = vld [vmem:[%s236 + $0x70] sm:$0xff]
      %v265 = vld [vmem:[%s236 + $0x78] sm:$0xff]
      %v266 = vld [vmem:[%s236 + $0x80] sm:$0xff]
      %v267 = vld [vmem:[%s236 + $0x88] sm:$0xff]
      %v268 = vld [vmem:[%s236 + $0x90] sm:$0xff]
      %v269 = vld [vmem:[%s236 + $0x98] sm:$0xff]
      %v270 = vld [vmem:[%s236 + $0xa0] sm:$0xff]
      %v271 = vld [vmem:[%s236 + $0xa8] sm:$0xff]
      %v272 = vld [vmem:[%s236 + $0xb0] sm:$0xff]
      %v273 = vld [vmem:[%s236 + $0xb8] sm:$0xff]
      %v274 = vld [vmem:[%s236 + $0xc0] sm:$0xff]
      %v275 = vld [vmem:[%s236 + $0xc8] sm:$0xff]
      %v276 = vld [vmem:[%s236 + $0xd0] sm:$0xff]
      %v277 = vld [vmem:[%s236 + $0xd8] sm:$0xff]
      %v278 = vld [vmem:[%s236 + $0xe0] sm:$0xff]
      %v279 = vld [vmem:[%s236 + $0xe8] sm:$0xff]
      %v280 = vld [vmem:[%s236 + $0xf0] sm:$0xff]
      %v281 = vld [vmem:[%s236 + $0xf8] sm:$0xff]
      %v282 = vld [vmem:[%s1] sm:$0x3]
      %v283 = vld [vmem:[%s2] sm:$0x1]
      %v284 = vld [vmem:[%s3] sm:$0x1]
      %v285 = vmul.f32 %v282, 0.001953125
      %v286 = vmul.f32 %v285, %v285
      %v288 = vrot.slane %v286, 7
      %v290 = vsub.f32 %v285, %v288
      %v291 = vadd.f32 %v290, 1e-05
      %v292 = vrsqrt.pop %v291
      %v294 = vlaneseq
      %v295 = vshrl.u32 %v294, 7
      %v296 = vsub.s32 0, %v295
      %v297 = vrot.slane %v283, %v296
      %v299 = vmul.f32 %v292, %v297
      %v301 = vrot.slane %v299, 1
      %v303 = vmul.f32 %v285, %v301
      %v304 = vsub.f32 %v284, %v303
      %v305 = vlaneseq
      %v306 = vshrl.u32 %v305, 7
      %v307 = vsub.s32 1, %v306
      %v308 = vrot.slane %v299, %v307
      %v309 = vmul.f32 %v250, %v308
      %v310 = vmul.f32 %v251, %v308
      %v311 = vmul.f32 %v252, %v308
      %v312 = vmul.f32 %v253, %v308
      %v313 = vmul.f32 %v254, %v308
      %v314 = vmul.f32 %v255, %v308
      %v315 = vmul.f32 %v256, %v308
      %v316 = vmul.f32 %v257, %v308
      %v317 = vmul.f32 %v258, %v308
      %v318 = vmul.f32 %v259, %v308
      %v319 = vmul.f32 %v260, %v308
      %v320 = vmul.f32 %v261, %v308
      %v321 = vmul.f32 %v262, %v308
      %v322 = vmul.f32 %v263, %v308
      %v323 = vmul.f32 %v264, %v308
      %v324 = vmul.f32 %v265, %v308
      %v325 = vmul.f32 %v266, %v308
      %v326 = vmul.f32 %v267, %v308
      %v327 = vmul.f32 %v268, %v308
      %v328 = vmul.f32 %v269, %v308
      %v329 = vmul.f32 %v270, %v308
      %v330 = vmul.f32 %v271, %v308
      %v331 = vmul.f32 %v272, %v308
      %v332 = vmul.f32 %v273, %v308
      %v333 = vmul.f32 %v274, %v308
      %v334 = vmul.f32 %v275, %v308
      %v335 = vmul.f32 %v276, %v308
      %v336 = vmul.f32 %v277, %v308
      %v337 = vmul.f32 %v278, %v308
      %v338 = vmul.f32 %v279, %v308
      %v339 = vmul.f32 %v280, %v308
      %v340 = vmul.f32 %v281, %v308
      %v342 = vlaneseq
      %v343 = vshrl.u32 %v342, 7
      %v344 = vsub.s32 0, %v343
      %v345 = vrot.slane %v304, %v344
      %v347 = vadd.f32 %v309, %v345
      %v348 = vadd.f32 %v310, %v345
      %v349 = vadd.f32 %v311, %v345
      %v350 = vadd.f32 %v312, %v345
      %v351 = vadd.f32 %v313, %v345
      %v352 = vadd.f32 %v314, %v345
      %v353 = vadd.f32 %v315, %v345
      %v354 = vadd.f32 %v316, %v345
      %v355 = vadd.f32 %v317, %v345
      %v356 = vadd.f32 %v318, %v345
      %v357 = vadd.f32 %v319, %v345
      %v358 = vadd.f32 %v320, %v345
      %v359 = vadd.f32 %v321, %v345
      %v360 = vadd.f32 %v322, %v345
      %v361 = vadd.f32 %v323, %v345
      %v362 = vadd.f32 %v324, %v345
      %v363 = vadd.f32 %v325, %v345
      %v364 = vadd.f32 %v326, %v345
      %v365 = vadd.f32 %v327, %v345
      %v366 = vadd.f32 %v328, %v345
      %v367 = vadd.f32 %v329, %v345
      %v368 = vadd.f32 %v330, %v345
      %v369 = vadd.f32 %v331, %v345
      %v370 = vadd.f32 %v332, %v345
      %v371 = vadd.f32 %v333, %v345
      %v372 = vadd.f32 %v334, %v345
      %v373 = vadd.f32 %v335, %v345
      %v374 = vadd.f32 %v336, %v345
      %v375 = vadd.f32 %v337, %v345
      %v376 = vadd.f32 %v338, %v345
      %v377 = vadd.f32 %v339, %v345
      %v378 = vadd.f32 %v340, %v345
      %v379 = vmax.f32 %v347, 0.0
      %v380 = vmax.f32 %v348, 0.0
      %v381 = vmax.f32 %v349, 0.0
      %v382 = vmax.f32 %v350, 0.0
      %v383 = vmax.f32 %v351, 0.0
      %v384 = vmax.f32 %v352, 0.0
      %v385 = vmax.f32 %v353, 0.0
      %v386 = vmax.f32 %v354, 0.0
      %v387 = vmax.f32 %v355, 0.0
      %v388 = vmax.f32 %v356, 0.0
      %v389 = vmax.f32 %v357, 0.0
      %v390 = vmax.f32 %v358, 0.0
      %v391 = vmax.f32 %v359, 0.0
      %v392 = vmax.f32 %v360, 0.0
      %v393 = vmax.f32 %v361, 0.0
      %v394 = vmax.f32 %v362, 0.0
      %v395 = vmax.f32 %v363, 0.0
      %v396 = vmax.f32 %v364, 0.0
      %v397 = vmax.f32 %v365, 0.0
      %v398 = vmax.f32 %v366, 0.0
      %v399 = vmax.f32 %v367, 0.0
      %v400 = vmax.f32 %v368, 0.0
      %v401 = vmax.f32 %v369, 0.0
      %v402 = vmax.f32 %v370, 0.0
      %v403 = vmax.f32 %v371, 0.0
      %v404 = vmax.f32 %v372, 0.0
      %v405 = vmax.f32 %v373, 0.0
      %v406 = vmax.f32 %v374, 0.0
      %v407 = vmax.f32 %v375, 0.0
      %v408 = vmax.f32 %v376, 0.0
      %v409 = vmax.f32 %v377, 0.0
      %v410 = vmax.f32 %v378, 0.0
      %v411 = vld [vmem:[%s242] sm:$0xff]
      %v412 = vld [vmem:[%s242 + $0x8] sm:$0xff]
      %v413 = vld [vmem:[%s242 + $0x10] sm:$0xff]
      %v414 = vld [vmem:[%s242 + $0x18] sm:$0xff]
      %v415 = vld [vmem:[%s242 + $0x20] sm:$0xff]
      %v416 = vld [vmem:[%s242 + $0x28] sm:$0xff]
      %v417 = vld [vmem:[%s242 + $0x30] sm:$0xff]
      %v418 = vld [vmem:[%s242 + $0x38] sm:$0xff]
      %v419 = vld [vmem:[%s242 + $0x40] sm:$0xff]
      %v420 = vld [vmem:[%s242 + $0x48] sm:$0xff]
      %v421 = vld [vmem:[%s242 + $0x50] sm:$0xff]
      %v422 = vld [vmem:[%s242 + $0x58] sm:$0xff]
      %v423 = vld [vmem:[%s242 + $0x60] sm:$0xff]
      %v424 = vld [vmem:[%s242 + $0x68] sm:$0xff]
      %v425 = vld [vmem:[%s242 + $0x70] sm:$0xff]
      %v426 = vld [vmem:[%s242 + $0x78] sm:$0xff]
      %v427 = vld [vmem:[%s242 + $0x80] sm:$0xff]
      %v428 = vld [vmem:[%s242 + $0x88] sm:$0xff]
      %v429 = vld [vmem:[%s242 + $0x90] sm:$0xff]
      %v430 = vld [vmem:[%s242 + $0x98] sm:$0xff]
      %v431 = vld [vmem:[%s242 + $0xa0] sm:$0xff]
      %v432 = vld [vmem:[%s242 + $0xa8] sm:$0xff]
      %v433 = vld [vmem:[%s242 + $0xb0] sm:$0xff]
      %v434 = vld [vmem:[%s242 + $0xb8] sm:$0xff]
      %v435 = vld [vmem:[%s242 + $0xc0] sm:$0xff]
      %v436 = vld [vmem:[%s242 + $0xc8] sm:$0xff]
      %v437 = vld [vmem:[%s242 + $0xd0] sm:$0xff]
      %v438 = vld [vmem:[%s242 + $0xd8] sm:$0xff]
      %v439 = vld [vmem:[%s242 + $0xe0] sm:$0xff]
      %v440 = vld [vmem:[%s242 + $0xe8] sm:$0xff]
      %v441 = vld [vmem:[%s242 + $0xf0] sm:$0xff]
      %v442 = vld [vmem:[%s242 + $0xf8] sm:$0xff]
      %v443 = vadd.f32 %v379, %v411
      %v444 = vadd.f32 %v380, %v412
      %v445 = vadd.f32 %v381, %v413
      %v446 = vadd.f32 %v382, %v414
      %v447 = vadd.f32 %v383, %v415
      %v448 = vadd.f32 %v384, %v416
      %v449 = vadd.f32 %v385, %v417
      %v450 = vadd.f32 %v386, %v418
      %v451 = vadd.f32 %v387, %v419
      %v452 = vadd.f32 %v388, %v420
      %v453 = vadd.f32 %v389, %v421
      %v454 = vadd.f32 %v390, %v422
      %v455 = vadd.f32 %v391, %v423
      %v456 = vadd.f32 %v392, %v424
      %v457 = vadd.f32 %v393, %v425
      %v458 = vadd.f32 %v394, %v426
      %v459 = vadd.f32 %v395, %v427
      %v460 = vadd.f32 %v396, %v428
      %v461 = vadd.f32 %v397, %v429
      %v462 = vadd.f32 %v398, %v430
      %v463 = vadd.f32 %v399, %v431
      %v464 = vadd.f32 %v400, %v432
      %v465 = vadd.f32 %v401, %v433
      %v466 = vadd.f32 %v402, %v434
      %v467 = vadd.f32 %v403, %v435
      %v468 = vadd.f32 %v404, %v436
      %v469 = vadd.f32 %v405, %v437
      %v470 = vadd.f32 %v406, %v438
      %v471 = vadd.f32 %v407, %v439
      %v472 = vadd.f32 %v408, %v440
      %v473 = vadd.f32 %v409, %v441
      %v474 = vadd.f32 %v410, %v442
      %v475 = vmax.f32 %v443, 0.0
      %v476 = vmax.f32 %v444, 0.0
      %v477 = vmax.f32 %v445, 0.0
      %v478 = vmax.f32 %v446, 0.0
      %v479 = vmax.f32 %v447, 0.0
      %v480 = vmax.f32 %v448, 0.0
      %v481 = vmax.f32 %v449, 0.0
      %v482 = vmax.f32 %v450, 0.0
      %v483 = vmax.f32 %v451, 0.0
      %v484 = vmax.f32 %v452, 0.0
      %v485 = vmax.f32 %v453, 0.0
      %v486 = vmax.f32 %v454, 0.0
      %v487 = vmax.f32 %v455, 0.0
      %v488 = vmax.f32 %v456, 0.0
      %v489 = vmax.f32 %v457, 0.0
      %v490 = vmax.f32 %v458, 0.0
      %v491 = vmax.f32 %v459, 0.0
      %v492 = vmax.f32 %v460, 0.0
      %v493 = vmax.f32 %v461, 0.0
      %v494 = vmax.f32 %v462, 0.0
      %v495 = vmax.f32 %v463, 0.0
      %v496 = vmax.f32 %v464, 0.0
      %v497 = vmax.f32 %v465, 0.0
      %v498 = vmax.f32 %v466, 0.0
      %v499 = vmax.f32 %v467, 0.0
      %v500 = vmax.f32 %v468, 0.0
      %v501 = vmax.f32 %v469, 0.0
      %v502 = vmax.f32 %v470, 0.0
      %v503 = vmax.f32 %v471, 0.0
      %v504 = vmax.f32 %v472, 0.0
      %v505 = vmax.f32 %v473, 0.0
      %v506 = vmax.f32 %v474, 0.0
      %507 = vst [vmem:[%s248] sm:$0xff] %v475
      %508 = vst [vmem:[%s248 + $0x8] sm:$0xff] %v476
      %509 = vst [vmem:[%s248 + $0x10] sm:$0xff] %v477
      %510 = vst [vmem:[%s248 + $0x18] sm:$0xff] %v478
      %511 = vst [vmem:[%s248 + $0x20] sm:$0xff] %v479
      %512 = vst [vmem:[%s248 + $0x28] sm:$0xff] %v480
      %513 = vst [vmem:[%s248 + $0x30] sm:$0xff] %v481
      %514 = vst [vmem:[%s248 + $0x38] sm:$0xff] %v482
      %515 = vst [vmem:[%s248 + $0x40] sm:$0xff] %v483
      %516 = vst [vmem:[%s248 + $0x48] sm:$0xff] %v484
      %517 = vst [vmem:[%s248 + $0x50] sm:$0xff] %v485
      %518 = vst [vmem:[%s248 + $0x58] sm:$0xff] %v486
      %519 = vst [vmem:[%s248 + $0x60] sm:$0xff] %v487
      %520 = vst [vmem:[%s248 + $0x68] sm:$0xff] %v488
      %521 = vst [vmem:[%s248 + $0x70] sm:$0xff] %v489
      %522 = vst [vmem:[%s248 + $0x78] sm:$0xff] %v490
      %523 = vst [vmem:[%s248 + $0x80] sm:$0xff] %v491
      %524 = vst [vmem:[%s248 + $0x88] sm:$0xff] %v492
      %525 = vst [vmem:[%s248 + $0x90] sm:$0xff] %v493
      %526 = vst [vmem:[%s248 + $0x98] sm:$0xff] %v494
      %527 = vst [vmem:[%s248 + $0xa0] sm:$0xff] %v495
      %528 = vst [vmem:[%s248 + $0xa8] sm:$0xff] %v496
      %529 = vst [vmem:[%s248 + $0xb0] sm:$0xff] %v497
      %530 = vst [vmem:[%s248 + $0xb8] sm:$0xff] %v498
      %531 = vst [vmem:[%s248 + $0xc0] sm:$0xff] %v499
      %532 = vst [vmem:[%s248 + $0xc8] sm:$0xff] %v500
      %533 = vst [vmem:[%s248 + $0xd0] sm:$0xff] %v501
      %534 = vst [vmem:[%s248 + $0xd8] sm:$0xff] %v502
      %535 = vst [vmem:[%s248 + $0xe0] sm:$0xff] %v503
      %536 = vst [vmem:[%s248 + $0xe8] sm:$0xff] %v504
      %537 = vst [vmem:[%s248 + $0xf0] sm:$0xff] %v505
      %538 = vst [vmem:[%s248 + $0xf8] sm:$0xff] %v506
      %s539 = smul.u32 32, %s16
      %p540 = scmp.lt.s32.totalorder %s539, 63
      %s541 = scalar_select %p540, %s539, 63
      %s542 = smul.addr %s541, 8
      %s543 = scalar_lea.vmem %s5, %s542
      // Predicated region
      $region41: #{res_block_forward.7} parent=39 // pred_check
        %p544 = pneg %p149
      $region42: #{res_block_forward.7} parent=39 // pred_check_branch
        %546 = sbr.rel (%p544) target = $region44
      $region43: #{res_block_forward.7} parent=39 // pred_region
        %s547 = smul.u32 32, %s16
      $region44: #{res_block_forward.7} parent=39 // pred_fallthru
        _
    $region40: #{res_block_forward.7} parent=5 // pred_fallthru
      _
    %p548 = scmp.le.s32.totalorder 2, %s11
    // Predicated region
    $region45: #{res_block_forward.7} parent=5 // pred_check
      %p549 = pneg %p548
    $region46: #{res_block_forward.7} parent=5 // pred_check_branch
      %551 = sbr.rel (%p549) target = $region48
    $region47: #{res_block_forward.7} parent=5 // pred_region
      %s552 = ssub.s32 %s11, 2
      // Predicated region
      $region49: #{res_block_forward.7} parent=47 // pred_check
        %p553 = pneg %p155
      $region50: #{res_block_forward.7} parent=47 // pred_check_branch
        %555 = sbr.rel (%p553) target = $region52
      $region51: #{res_block_forward.7} parent=47 // pred_region
        %s556 = smul.u32 32, %s17
        %p557 = scmp.lt.s32.totalorder %s556, 63
        %s558 = scalar_select %p557, %s556, 63
        %s559 = smul.addr %s558, 8
        %s560 = scalar_lea.vmem %s5, %s559
      $region52: #{res_block_forward.7} parent=47 // pred_fallthru
        _
    $region48: #{res_block_forward.7} parent=5 // pred_fallthru
      _
  $region6: #{res_block_forward.7} parent=0 // loop_footer
    %s15 = sadd.s32 1, %s11
  $region7: #{res_block_forward.7} parent=0 // loop_footer_branch
    %10 = sbr.rel target = $region3
  $region8: #{res_block_forward.7} parent=0 // loop_exit
    _

</llo_original>
